<compile_context>
chip_gen: v5e
topology: v5e:2x2
jax: 0.10.0
libtpu: 0.0.40
codegen_flags: <defaults>
</compile_context>

<pallas_src>
import jax
import jax.numpy as jnp
from jax.experimental import pallas as pl
from jax.experimental.pallas import tpu as pltpu


def _leaky_relu(x, slope=0.2):
    # For slope in (0, 1): max(x, slope * x) == leaky_relu(x, slope).
    return jnp.maximum(x, slope * x)


def _conv_stack_kernel(x_ref, w1_ref, b1_ref, w2_ref, b2_ref, w3_ref, b3_ref, y_ref):
    """Per-batch block: x [1, N, 3] -> y [1, 512, N] (PyTorch conv channel-major layout)."""
    x = x_ref[0]                                                                     # [N, 3]
    h = _leaky_relu(jnp.dot(x, w1_ref[...], preferred_element_type=jnp.float32) + b1_ref[...])  # [N, 64]
    h = _leaky_relu(jnp.dot(h, w2_ref[...], preferred_element_type=jnp.float32) + b2_ref[...])  # [N, 128]
    h = _leaky_relu(jnp.dot(h, w3_ref[...], preferred_element_type=jnp.float32) + b3_ref[...])  # [N, 512]
    # Write in PyTorch conv layout [512, N]: one XLU transpose, lane-dense store.
    y_ref[0] = jnp.transpose(h).astype(y_ref.dtype)


def _fc_head_kernel(z_ref, w1_ref, b1_ref, w2_ref, b2_ref, w3_ref, b3_ref, o_ref):
    """Per-batch block: z [1, N, 512] -> o [1, 1, 1] = mean over points of leaky_relu(fc3)."""
    z = z_ref[0]                                                                     # [N, 512]
    h = _leaky_relu(jnp.dot(z, w1_ref[...], preferred_element_type=jnp.float32) + b1_ref[...])  # [N, 128]
    h = _leaky_relu(jnp.dot(h, w2_ref[...], preferred_element_type=jnp.float32) + b2_ref[...])  # [N, 64]
    # fc3 has a single output unit: broadcast-multiply + lane reduce instead of a
    # 1-lane MXU matmul.  w3_ref holds the native [1, 64] weight (untransposed).
    t = jnp.sum(h * w3_ref[...], axis=1, keepdims=True) + b3_ref[...]                # [N, 1]
    t = _leaky_relu(t)
    o_ref[0] = jnp.mean(t, axis=0, keepdims=True).astype(o_ref.dtype)                # [1, 1]


def discriminator_forward(x, params):
    """x: [B, N, 3] float32 (PyTorch layout before the in-module transpose) -> [B, 1]."""
    B, N, _ = x.shape
    f32 = jnp.float32

    # Pre-transpose weights to [in, out] and biases to [1, out] rows (tiny, one-time).
    wc1, wc2, wc3 = params["w_conv1"].T, params["w_conv2"].T, params["w_conv3"].T
    bc1, bc2, bc3 = (params["b_conv1"][None, :], params["b_conv2"][None, :],
                     params["b_conv3"][None, :])
    wf1, wf2 = params["w_fc1"].T, params["w_fc2"].T
    wf3 = params["w_fc3"]                       # kept as [1, 64] for the reduce form
    bf1, bf2, bf3 = (params["b_fc1"][None, :], params["b_fc2"][None, :],
                     params["b_fc3"][None, :])
    C3 = wc3.shape[1]                           # 512

    def full2d(a):                              # whole-array, grid-invariant spec
        return pl.BlockSpec(a.shape, lambda b: (0, 0))

    conv_cost = pl.CostEstimate(
        flops=2 * B * N * (3 * 64 + 64 * 128 + 128 * 512),
        transcendentals=0,
        bytes_accessed=4 * (B * N * 3 + wc1.size + wc2.size + wc3.size
                            + bc1.size + bc2.size + bc3.size + B * C3 * N),
    )
    y = pl.pallas_call(
        _conv_stack_kernel,
        out_shape=jax.ShapeDtypeStruct((B, C3, N), f32),
        grid=(B,),
        in_specs=[
            pl.BlockSpec((1, N, 3), lambda b: (b, 0, 0)),
            full2d(wc1), full2d(bc1), full2d(wc2), full2d(bc2), full2d(wc3), full2d(bc3),
        ],
        out_specs=pl.BlockSpec((1, C3, N), lambda b: (b, 0, 0)),
        compiler_params=pltpu.CompilerParams(dimension_semantics=("parallel",)),
        cost_estimate=conv_cost,
    )(x, wc1, bc1, wc2, bc2, wc3, bc3)

    # Faithful to PyTorch's `x.reshape(-1, point_num, 512)` on the contiguous
    # [B, 512, N] conv output: a row-major reinterpretation (free bitcast in XLA).
    z = y.reshape(B, N, C3)

    fc_cost = pl.CostEstimate(
        flops=2 * B * N * (512 * 128 + 128 * 64 + 64),
        transcendentals=0,
        bytes_accessed=4 * (B * N * C3 + wf1.size + wf2.size + wf3.size
                            + bf1.size + bf2.size + bf3.size + B),
    )
    o = pl.pallas_call(
        _fc_head_kernel,
        out_shape=jax.ShapeDtypeStruct((B, 1, 1), f32),
        grid=(B,),
        in_specs=[
            pl.BlockSpec((1, N, C3), lambda b: (b, 0, 0)),
            full2d(wf1), full2d(bf1), full2d(wf2), full2d(bf2), full2d(wf3), full2d(bf3),
        ],
        out_specs=pl.BlockSpec((1, 1, 1), lambda b: (b, 0, 0)),
        compiler_params=pltpu.CompilerParams(dimension_semantics=("parallel",)),
        cost_estimate=fc_cost,
    )(z, wf1, bf1, wf2, bf2, wf3, bf3)

    return o[:, 0, :]                           # [B, 1]


def reference(x, params):
    """Pure-JAX mirror of the PyTorch Discriminator.forward (including the raw reshape)."""
    B, N, _ = x.shape
    lrelu = lambda v: jnp.where(v >= 0, v, 0.2 * v)
    xt = jnp.transpose(x, (0, 2, 1))                                                 # [B, 3, N]
    h = lrelu(jnp.einsum("oi,bin->bon", params["w_conv1"], xt) + params["b_conv1"][None, :, None])
    h = lrelu(jnp.einsum("oi,bin->bon", params["w_conv2"], h) + params["b_conv2"][None, :, None])
    h = lrelu(jnp.einsum("oi,bin->bon", params["w_conv3"], h) + params["b_conv3"][None, :, None])
    z = h.reshape(-1, N, 512)                                                         # raw reshape, as in PyTorch
    z = lrelu(z @ params["w_fc1"].T + params["b_fc1"])
    z = lrelu(z @ params["w_fc2"].T + params["b_fc2"])
    z = lrelu(z @ params["w_fc3"].T + params["b_fc3"])
    return jnp.mean(z, axis=1)                                                        # [B, 1]


if __name__ == "__main__":
    B, N = 2, 128                       # batch=2, point_num=128 (small), 3 input channels

    key = jax.random.PRNGKey(0)
    ks = jax.random.split(key, 13)
    s = 0.1
    params = {
        "w_conv1": s * jax.random.normal(ks[0], (64, 3), jnp.float32),
        "b_conv1": s * jax.random.normal(ks[1], (64,), jnp.float32),
        "w_conv2": s * jax.random.normal(ks[2], (128, 64), jnp.float32),
        "b_conv2": s * jax.random.normal(ks[3], (128,), jnp.float32),
        "w_conv3": s * jax.random.normal(ks[4], (512, 128), jnp.float32),
        "b_conv3": s * jax.random.normal(ks[5], (512,), jnp.float32),
        "w_fc1":   s * jax.random.normal(ks[6], (128, 512), jnp.float32),
        "b_fc1":   s * jax.random.normal(ks[7], (128,), jnp.float32),
        "w_fc2":   s * jax.random.normal(ks[8], (64, 128), jnp.float32),
        "b_fc2":   s * jax.random.normal(ks[9], (64,), jnp.float32),
        "w_fc3":   s * jax.random.normal(ks[10], (1, 64), jnp.float32),
        "b_fc3":   s * jax.random.normal(ks[11], (1,), jnp.float32),
    }
    x = jax.random.normal(ks[12], (B, N, 3), jnp.float32)

    fwd = jax.jit(discriminator_forward)
    out = jax.block_until_ready(fwd(x, params))

    ref = reference(x, params)
    assert out.shape == (B, 1)
    assert jnp.allclose(out, ref, rtol=1e-3, atol=1e-3), "mismatch vs reference"
    print("KERNEL_OK")
</pallas_src>

<mosaic_0001>
module attributes {stable_mosaic.version = 11 : i64} {
  func.func @_conv_stack_kernel(%arg0: i32, %arg1: memref<1x128x3xf32, #tpu.memory_space<vmem>>, %arg2: memref<3x64xf32, #tpu.memory_space<vmem>>, %arg3: memref<1x64xf32, #tpu.memory_space<vmem>>, %arg4: memref<64x128xf32, #tpu.memory_space<vmem>>, %arg5: memref<1x128xf32, #tpu.memory_space<vmem>>, %arg6: memref<128x512xf32, #tpu.memory_space<vmem>>, %arg7: memref<1x512xf32, #tpu.memory_space<vmem>>, %arg8: memref<1x512x128xf32, #tpu.memory_space<vmem>>) attributes {dimension_semantics = [#tpu.dimension_semantics<parallel>], iteration_bounds = array<i64: 2>, scalar_prefetch = 0 : i64, scratch_operands = 0 : i64, tpu.core_type = #tpu.core_type<tc>, window_params = [{transform_indices = @transform_0, window_bounds = array<i64: 1, 128, 3>}, {pipeline_mode = #tpu.pipeline_mode<synchronous>, transform_indices = @transform_1, window_bounds = array<i64: 3, 64>}, {pipeline_mode = #tpu.pipeline_mode<synchronous>, transform_indices = @transform_2, window_bounds = array<i64: 1, 64>}, {pipeline_mode = #tpu.pipeline_mode<synchronous>, transform_indices = @transform_3, window_bounds = array<i64: 64, 128>}, {pipeline_mode = #tpu.pipeline_mode<synchronous>, transform_indices = @transform_4, window_bounds = array<i64: 1, 128>}, {pipeline_mode = #tpu.pipeline_mode<synchronous>, transform_indices = @transform_5, window_bounds = array<i64: 128, 512>}, {pipeline_mode = #tpu.pipeline_mode<synchronous>, transform_indices = @transform_6, window_bounds = array<i64: 1, 512>}, {transform_indices = @transform_7, window_bounds = array<i64: 1, 512, 128>}]} {
    %c0 = arith.constant 0 : index
    %c0_0 = arith.constant 0 : index
    %c0_1 = arith.constant 0 : index
    %0 = vector.load %arg1[%c0, %c0_0, %c0_1] : memref<1x128x3xf32, #tpu.memory_space<vmem>>, vector<1x128x3xf32>
    %1 = vector.shape_cast %0 : vector<1x128x3xf32> to vector<128x3xf32>
    %c0_2 = arith.constant 0 : index
    %c0_3 = arith.constant 0 : index
    %2 = vector.load %arg2[%c0_2, %c0_3] : memref<3x64xf32, #tpu.memory_space<vmem>>, vector<3x64xf32>
    %cst = arith.constant dense<0.000000e+00> : vector<128x64xf32>
    %3 = tpu.matmul %1, %2, %cst {dimension_numbers = #tpu.dot_dimension_numbers<[1], [0], [0], [1], [0, 0, 1, 1], [], []>} : vector<128x3xf32>, vector<3x64xf32>, vector<128x64xf32> -> vector<128x64xf32>
    %c0_4 = arith.constant 0 : index
    %c0_5 = arith.constant 0 : index
    %4 = vector.load %arg3[%c0_4, %c0_5] : memref<1x64xf32, #tpu.memory_space<vmem>>, vector<1x64xf32>
    %5 = vector.broadcast %4 : vector<1x64xf32> to vector<128x64xf32>
    %6 = arith.addf %3, %5 : vector<128x64xf32>
    %cst_6 = arith.constant 2.000000e-01 : f32
    %7 = vector.broadcast %cst_6 : f32 to vector<128x64xf32>
    %8 = arith.mulf %7, %6 : vector<128x64xf32>
    %9 = arith.maximumf %6, %8 : vector<128x64xf32>
    %c0_7 = arith.constant 0 : index
    %c0_8 = arith.constant 0 : index
    %10 = vector.load %arg4[%c0_7, %c0_8] : memref<64x128xf32, #tpu.memory_space<vmem>>, vector<64x128xf32>
    %cst_9 = arith.constant dense<0.000000e+00> : vector<128x128xf32>
    %11 = tpu.matmul %9, %10, %cst_9 {dimension_numbers = #tpu.dot_dimension_numbers<[1], [0], [0], [1], [0, 0, 1, 1], [], []>} : vector<128x64xf32>, vector<64x128xf32>, vector<128x128xf32> -> vector<128x128xf32>
    %c0_10 = arith.constant 0 : index
    %c0_11 = arith.constant 0 : index
    %12 = vector.load %arg5[%c0_10, %c0_11] : memref<1x128xf32, #tpu.memory_space<vmem>>, vector<1x128xf32>
    %13 = vector.broadcast %12 : vector<1x128xf32> to vector<128x128xf32>
    %14 = arith.addf %11, %13 : vector<128x128xf32>
    %cst_12 = arith.constant 2.000000e-01 : f32
    %15 = vector.broadcast %cst_12 : f32 to vector<128x128xf32>
    %16 = arith.mulf %15, %14 : vector<128x128xf32>
    %17 = arith.maximumf %14, %16 : vector<128x128xf32>
    %c0_13 = arith.constant 0 : index
    %c0_14 = arith.constant 0 : index
    %18 = vector.load %arg6[%c0_13, %c0_14] : memref<128x512xf32, #tpu.memory_space<vmem>>, vector<128x512xf32>
    %cst_15 = arith.constant dense<0.000000e+00> : vector<128x512xf32>
    %19 = tpu.matmul %17, %18, %cst_15 {dimension_numbers = #tpu.dot_dimension_numbers<[1], [0], [0], [1], [0, 0, 1, 1], [], []>} : vector<128x128xf32>, vector<128x512xf32>, vector<128x512xf32> -> vector<128x512xf32>
    %c0_16 = arith.constant 0 : index
    %c0_17 = arith.constant 0 : index
    %20 = vector.load %arg7[%c0_16, %c0_17] : memref<1x512xf32, #tpu.memory_space<vmem>>, vector<1x512xf32>
    %21 = vector.broadcast %20 : vector<1x512xf32> to vector<128x512xf32>
    %22 = arith.addf %19, %21 : vector<128x512xf32>
    %cst_18 = arith.constant 2.000000e-01 : f32
    %23 = vector.broadcast %cst_18 : f32 to vector<128x512xf32>
    %24 = arith.mulf %23, %22 : vector<128x512xf32>
    %25 = arith.maximumf %22, %24 : vector<128x512xf32>
    %26 = tpu.transpose %25, [1, 0] : vector<128x512xf32> -> vector<512x128xf32>
    %c0_19 = arith.constant 0 : index
    %c0_20 = arith.constant 0 : index
    %c0_21 = arith.constant 0 : index
    %27 = vector.load %arg8[%c0_19, %c0_20, %c0_21] : memref<1x512x128xf32, #tpu.memory_space<vmem>>, vector<1x512x128xf32>
    %28 = vector.shape_cast %27 : vector<1x512x128xf32> to vector<512x128xf32>
    %29 = vector.shape_cast %26 : vector<512x128xf32> to vector<1x512x128xf32>
    tpu.vector_store %arg8[%c0_19, %c0_20, %c0_21], %29 {strides = array<i32>} : memref<1x512x128xf32, #tpu.memory_space<vmem>>, vector<1x512x128xf32>,
    return
  }
  func.func @transform_0(%arg0: i32) -> (i32, i32, i32) {
    %c0_i32 = arith.constant 0 : i32
    %c0_i32_0 = arith.constant 0 : i32
    %c0_i32_1 = arith.constant 0 : i32
    return %arg0, %c0_i32, %c0_i32_0 : i32, i32, i32
  }
  func.func @transform_1(%arg0: i32) -> (i32, i32) {
    %c0_i32 = arith.constant 0 : i32
    %c0_i32_0 = arith.constant 0 : i32
    %c0_i32_1 = arith.constant 0 : i32
    return %c0_i32, %c0_i32_0 : i32, i32
  }
  func.func @transform_2(%arg0: i32) -> (i32, i32) {
    %c0_i32 = arith.constant 0 : i32
    %c0_i32_0 = arith.constant 0 : i32
    %c0_i32_1 = arith.constant 0 : i32
    return %c0_i32, %c0_i32_0 : i32, i32
  }
  func.func @transform_3(%arg0: i32) -> (i32, i32) {
    %c0_i32 = arith.constant 0 : i32
    %c0_i32_0 = arith.constant 0 : i32
    %c0_i32_1 = arith.constant 0 : i32
    return %c0_i32, %c0_i32_0 : i32, i32
  }
  func.func @transform_4(%arg0: i32) -> (i32, i32) {
    %c0_i32 = arith.constant 0 : i32
    %c0_i32_0 = arith.constant 0 : i32
    %c0_i32_1 = arith.constant 0 : i32
    return %c0_i32, %c0_i32_0 : i32, i32
  }
  func.func @transform_5(%arg0: i32) -> (i32, i32) {
    %c0_i32 = arith.constant 0 : i32
    %c0_i32_0 = arith.constant 0 : i32
    %c0_i32_1 = arith.constant 0 : i32
    return %c0_i32, %c0_i32_0 : i32, i32
  }
  func.func @transform_6(%arg0: i32) -> (i32, i32) {
    %c0_i32 = arith.constant 0 : i32
    %c0_i32_0 = arith.constant 0 : i32
    %c0_i32_1 = arith.constant 0 : i32
    return %c0_i32, %c0_i32_0 : i32, i32
  }
  func.func @transform_7(%arg0: i32) -> (i32, i32, i32) {
    %c0_i32 = arith.constant 0 : i32
    %c0_i32_0 = arith.constant 0 : i32
    %c0_i32_1 = arith.constant 0 : i32
    return %arg0, %c0_i32, %c0_i32_0 : i32, i32, i32
  }
}

module attributes {stable_mosaic.version = 11 : i64} {
  func.func @_fc_head_kernel(%arg0: i32, %arg1: memref<1x128x512xf32, #tpu.memory_space<vmem>>, %arg2: memref<512x128xf32, #tpu.memory_space<vmem>>, %arg3: memref<1x128xf32, #tpu.memory_space<vmem>>, %arg4: memref<128x64xf32, #tpu.memory_space<vmem>>, %arg5: memref<1x64xf32, #tpu.memory_space<vmem>>, %arg6: memref<1x64xf32, #tpu.memory_space<vmem>>, %arg7: memref<1x1xf32, #tpu.memory_space<vmem>>, %arg8: memref<1x1x1xf32, #tpu.memory_space<vmem>>) attributes {dimension_semantics = [#tpu.dimension_semantics<parallel>], iteration_bounds = array<i64: 2>, scalar_prefetch = 0 : i64, scratch_operands = 0 : i64, tpu.core_type = #tpu.core_type<tc>, window_params = [{transform_indices = @transform_0, window_bounds = array<i64: 1, 128, 512>}, {pipeline_mode = #tpu.pipeline_mode<synchronous>, transform_indices = @transform_1, window_bounds = array<i64: 512, 128>}, {pipeline_mode = #tpu.pipeline_mode<synchronous>, transform_indices = @transform_2, window_bounds = array<i64: 1, 128>}, {pipeline_mode = #tpu.pipeline_mode<synchronous>, transform_indices = @transform_3, window_bounds = array<i64: 128, 64>}, {pipeline_mode = #tpu.pipeline_mode<synchronous>, transform_indices = @transform_4, window_bounds = array<i64: 1, 64>}, {pipeline_mode = #tpu.pipeline_mode<synchronous>, transform_indices = @transform_5, window_bounds = array<i64: 1, 64>}, {pipeline_mode = #tpu.pipeline_mode<synchronous>, transform_indices = @transform_6, window_bounds = array<i64: 1, 1>}, {transform_indices = @transform_7, window_bounds = array<i64: 1, 1, 1>}]} {
    %c0 = arith.constant 0 : index
    %c0_0 = arith.constant 0 : index
    %c0_1 = arith.constant 0 : index
    %0 = vector.load %arg1[%c0, %c0_0, %c0_1] : memref<1x128x512xf32, #tpu.memory_space<vmem>>, vector<1x128x512xf32>
    %1 = vector.shape_cast %0 : vector<1x128x512xf32> to vector<128x512xf32>
    %c0_2 = arith.constant 0 : index
    %c0_3 = arith.constant 0 : index
    %2 = vector.load %arg2[%c0_2, %c0_3] : memref<512x128xf32, #tpu.memory_space<vmem>>, vector<512x128xf32>
    %cst = arith.constant dense<0.000000e+00> : vector<128x128xf32>
    %3 = tpu.matmul %1, %2, %cst {dimension_numbers = #tpu.dot_dimension_numbers<[1], [0], [0], [1], [0, 0, 1, 1], [], []>} : vector<128x512xf32>, vector<512x128xf32>, vector<128x128xf32> -> vector<128x128xf32>
    %c0_4 = arith.constant 0 : index
    %c0_5 = arith.constant 0 : index
    %4 = vector.load %arg3[%c0_4, %c0_5] : memref<1x128xf32, #tpu.memory_space<vmem>>, vector<1x128xf32>
    %5 = vector.broadcast %4 : vector<1x128xf32> to vector<128x128xf32>
    %6 = arith.addf %3, %5 : vector<128x128xf32>
    %cst_6 = arith.constant 2.000000e-01 : f32
    %7 = vector.broadcast %cst_6 : f32 to vector<128x128xf32>
    %8 = arith.mulf %7, %6 : vector<128x128xf32>
    %9 = arith.maximumf %6, %8 : vector<128x128xf32>
    %c0_7 = arith.constant 0 : index
    %c0_8 = arith.constant 0 : index
    %10 = vector.load %arg4[%c0_7, %c0_8] : memref<128x64xf32, #tpu.memory_space<vmem>>, vector<128x64xf32>
    %cst_9 = arith.constant dense<0.000000e+00> : vector<128x64xf32>
    %11 = tpu.matmul %9, %10, %cst_9 {dimension_numbers = #tpu.dot_dimension_numbers<[1], [0], [0], [1], [0, 0, 1, 1], [], []>} : vector<128x128xf32>, vector<128x64xf32>, vector<128x64xf32> -> vector<128x64xf32>
    %c0_10 = arith.constant 0 : index
    %c0_11 = arith.constant 0 : index
    %12 = vector.load %arg5[%c0_10, %c0_11] : memref<1x64xf32, #tpu.memory_space<vmem>>, vector<1x64xf32>
    %13 = vector.broadcast %12 : vector<1x64xf32> to vector<128x64xf32>
    %14 = arith.addf %11, %13 : vector<128x64xf32>
    %cst_12 = arith.constant 2.000000e-01 : f32
    %15 = vector.broadcast %cst_12 : f32 to vector<128x64xf32>
    %16 = arith.mulf %15, %14 : vector<128x64xf32>
    %17 = arith.maximumf %14, %16 : vector<128x64xf32>
    %c0_13 = arith.constant 0 : index
    %c0_14 = arith.constant 0 : index
    %18 = vector.load %arg6[%c0_13, %c0_14] : memref<1x64xf32, #tpu.memory_space<vmem>>, vector<1x64xf32>
    %19 = vector.broadcast %18 : vector<1x64xf32> to vector<128x64xf32>
    %20 = arith.mulf %17, %19 : vector<128x64xf32>
    %cst_15 = arith.constant dense<0.000000e+00> : vector<128xf32>
    %21 = vector.multi_reduction <add>, %20, %cst_15 [1] : vector<128x64xf32> to vector<128xf32>
    %22 = vector.shape_cast %21 : vector<128xf32> to vector<128x1xf32>
    %c0_16 = arith.constant 0 : index
    %c0_17 = arith.constant 0 : index
    %23 = vector.load %arg7[%c0_16, %c0_17] : memref<1x1xf32, #tpu.memory_space<vmem>>, vector<1x1xf32>
    %24 = vector.broadcast %23 : vector<1x1xf32> to vector<128x1xf32>
    %25 = arith.addf %22, %24 : vector<128x1xf32>
    %cst_18 = arith.constant 2.000000e-01 : f32
    %26 = vector.broadcast %cst_18 : f32 to vector<128x1xf32>
    %27 = arith.mulf %26, %25 : vector<128x1xf32>
    %28 = arith.maximumf %25, %27 : vector<128x1xf32>
    %cst_19 = arith.constant dense<0.000000e+00> : vector<1xf32>
    %29 = vector.multi_reduction <add>, %28, %cst_19 [0] : vector<128x1xf32> to vector<1xf32>
    %30 = vector.shape_cast %29 : vector<1xf32> to vector<1x1xf32>
    %cst_20 = arith.constant 1.280000e+02 : f32
    %31 = vector.broadcast %cst_20 : f32 to vector<1x1xf32>
    %32 = arith.divf %30, %31 : vector<1x1xf32>
    %c0_21 = arith.constant 0 : index
    %c0_22 = arith.constant 0 : index
    %c0_23 = arith.constant 0 : index
    %33 = vector.load %arg8[%c0_21, %c0_22, %c0_23] : memref<1x1x1xf32, #tpu.memory_space<vmem>>, vector<1x1x1xf32>
    %34 = vector.shape_cast %33 : vector<1x1x1xf32> to vector<1x1xf32>
    %35 = vector.shape_cast %32 : vector<1x1xf32> to vector<1x1x1xf32>
    tpu.vector_store %arg8[%c0_21, %c0_22, %c0_23], %35 {strides = array<i32>} : memref<1x1x1xf32, #tpu.memory_space<vmem>>, vector<1x1x1xf32>,
    return
  }
  func.func @transform_0(%arg0: i32) -> (i32, i32, i32) {
    %c0_i32 = arith.constant 0 : i32
    %c0_i32_0 = arith.constant 0 : i32
    %c0_i32_1 = arith.constant 0 : i32
    return %arg0, %c0_i32, %c0_i32_0 : i32, i32, i32
  }
  func.func @transform_1(%arg0: i32) -> (i32, i32) {
    %c0_i32 = arith.constant 0 : i32
    %c0_i32_0 = arith.constant 0 : i32
    %c0_i32_1 = arith.constant 0 : i32
    return %c0_i32, %c0_i32_0 : i32, i32
  }
  func.func @transform_2(%arg0: i32) -> (i32, i32) {
    %c0_i32 = arith.constant 0 : i32
    %c0_i32_0 = arith.constant 0 : i32
    %c0_i32_1 = arith.constant 0 : i32
    return %c0_i32, %c0_i32_0 : i32, i32
  }
  func.func @transform_3(%arg0: i32) -> (i32, i32) {
    %c0_i32 = arith.constant 0 : i32
    %c0_i32_0 = arith.constant 0 : i32
    %c0_i32_1 = arith.constant 0 : i32
    return %c0_i32, %c0_i32_0 : i32, i32
  }
  func.func @transform_4(%arg0: i32) -> (i32, i32) {
    %c0_i32 = arith.constant 0 : i32
    %c0_i32_0 = arith.constant 0 : i32
    %c0_i32_1 = arith.constant 0 : i32
    return %c0_i32, %c0_i32_0 : i32, i32
  }
  func.func @transform_5(%arg0: i32) -> (i32, i32) {
    %c0_i32 = arith.constant 0 : i32
    %c0_i32_0 = arith.constant 0 : i32
    %c0_i32_1 = arith.constant 0 : i32
    return %c0_i32, %c0_i32_0 : i32, i32
  }
  func.func @transform_6(%arg0: i32) -> (i32, i32) {
    %c0_i32 = arith.constant 0 : i32
    %c0_i32_0 = arith.constant 0 : i32
    %c0_i32_1 = arith.constant 0 : i32
    return %c0_i32, %c0_i32_0 : i32, i32
  }
  func.func @transform_7(%arg0: i32) -> (i32, i32, i32) {
    %c0_i32 = arith.constant 0 : i32
    %c0_i32_0 = arith.constant 0 : i32
    %c0_i32_1 = arith.constant 0 : i32
    return %arg0, %c0_i32, %c0_i32_0 : i32, i32, i32
  }
}

</mosaic_0001>

<llo_original>
// kernel: discriminator_forward.2
$region0: #{discriminator_forward.2}
  #allocation0 [shape = 'u32[]', space=smem, size = 0x4, offset = 0x4, fixed_abs, tag = 'smem constant byte address 0x4 - core index']
  #allocation1 [shape = 'u32[72,128]{1,0:T(1,128)}', space=vmem, size = 0x9000, scoped, tag = 'internal scratch']
  %s0 = inlined_call_operand.vmem [shape: f32[2,128,3], index: 0, kind: input, shape index: {}]
  %s1 = inlined_call_operand.vmem [shape: f32[3,64], index: 1, kind: input, shape index: {}]
  %s2 = inlined_call_operand.vmem [shape: f32[1,64], index: 2, kind: input, shape index: {}]
  %s3 = inlined_call_operand.vmem [shape: f32[64,128], index: 3, kind: input, shape index: {}]
  %s4 = inlined_call_operand.vmem [shape: f32[1,128], index: 4, kind: input, shape index: {}]
  %s5 = inlined_call_operand.vmem [shape: f32[128,512], index: 5, kind: input, shape index: {}]
  %s6 = inlined_call_operand.vmem [shape: f32[1,512], index: 6, kind: input, shape index: {}]
  %s7 = inlined_call_operand.vmem [shape: f32[2,512,128], index: 7, kind: output, shape index: {}]
  %s8 = sld [smem:[#allocation0]]
  $region61: #{discriminator_forward.2} parent=0
    _
  %s10 = ssub.s32 1, %s8
  %s11 = scalar_select 0, %s10, %s8
  loop: start=0, step=1, limit=4
  $region2: #{discriminator_forward.2} parent=0 // loop_pre_header
    _
  $region3: #{discriminator_forward.2} parent=0 // loop_header
    %s13 = sphi 0, %s17
    %p14 = scmp.ge.s32.totalorder %s13, 4
    %s23 = sphi 0, %s25
    %s26 = sphi 0, %s23
    %s27 = sphi 0, %s26
    %s43 = sphi 0, %s27
    %s47 = sphi 0, %s47
    %s49 = sphi 0, %s47
    %s50 = sphi 0, %s49
    %s64 = sphi 0, %s50
    %s68 = sphi 0, %s68
    %s70 = sphi 0, %s68
    %s71 = sphi 0, %s70
    %s85 = sphi 0, %s71
    %s89 = sphi 0, %s89
    %s91 = sphi 0, %s89
    %s92 = sphi 0, %s91
    %s106 = sphi 0, %s92
    %s110 = sphi 0, %s110
    %s112 = sphi 0, %s110
    %s113 = sphi 0, %s112
    %s127 = sphi 0, %s113
    %s131 = sphi 0, %s131
    %s133 = sphi 0, %s131
    %s134 = sphi 0, %s133
    %s148 = sphi 0, %s134
    %s152 = sphi 0, %s152
    %s154 = sphi 0, %s152
    %s155 = sphi 0, %s154
    %s169 = sphi 0, %s155
    %s175 = sphi 0, %s177
    %s178 = sphi 0, %s175
    %s179 = sphi 0, %s178
    %s195 = sphi 0, %s179
  $region4: #{discriminator_forward.2} parent=0 // loop_header_branch
    %16 = sbr.rel (%p14) target = $region8
  $region5: #{discriminator_forward.2} parent=0 // loop_body
    %s18 = ssub.s32 %s13, 1
    %s19 = ssub.s32 %s13, 2
    %s20 = sadd.s32 %s13, 1
    %s21 = ssub.s32 %s13, %s20
    %p22 = scmp.eq.s32.totalorder %s21, 0
    %s24 = sadd.s32 %s23, 1
    %s25 = scalar_select %p22, %s23, %s24
    %p28 = pneg %p22
    %p29 = scmp.eq.s32.totalorder %s13, 1
    %p30 = por %p28, %p29
    %p31 = scmp.ne.s32.totalorder %s23, %s26
    %p32 = scmp.eq.s32.totalorder %s13, 0
    %p33 = por %p31, %p32
    %p34 = scmp.ne.s32.totalorder %s23, %s26
    %p35 = scmp.eq.s32.totalorder %s18, 1
    %p36 = por %p34, %p35
    %p37 = scmp.ne.s32.totalorder %s26, %s27
    %p38 = scmp.eq.s32.totalorder %s18, 0
    %p39 = por %p37, %p38
    %p40 = scmp.ne.s32.totalorder %s26, %s27
    %p41 = scmp.eq.s32.totalorder %s19, 1
    %p42 = por %p40, %p41
    %p44 = scmp.ne.s32.totalorder %s27, %s43
    %p45 = scmp.eq.s32.totalorder %s19, 0
    %p46 = por %p44, %p45
    %s48 = sadd.s32 %s47, 1
    %p51 = scmp.eq.s32.totalorder %s13, 1
    %p52 = scmp.ne.s32.totalorder %s47, %s49
    %p53 = scmp.eq.s32.totalorder %s13, 0
    %p54 = por %p52, %p53
    %p55 = scmp.ne.s32.totalorder %s47, %s49
    %p56 = scmp.eq.s32.totalorder %s18, 1
    %p57 = por %p55, %p56
    %p58 = scmp.ne.s32.totalorder %s49, %s50
    %p59 = scmp.eq.s32.totalorder %s18, 0
    %p60 = por %p58, %p59
    %p61 = scmp.ne.s32.totalorder %s49, %s50
    %p62 = scmp.eq.s32.totalorder %s19, 1
    %p63 = por %p61, %p62
    %p65 = scmp.ne.s32.totalorder %s50, %s64
    %p66 = scmp.eq.s32.totalorder %s19, 0
    %p67 = por %p65, %p66
    %s69 = sadd.s32 %s68, 1
    %p72 = scmp.eq.s32.totalorder %s13, 1
    %p73 = scmp.ne.s32.totalorder %s68, %s70
    %p74 = scmp.eq.s32.totalorder %s13, 0
    %p75 = por %p73, %p74
    %p76 = scmp.ne.s32.totalorder %s68, %s70
    %p77 = scmp.eq.s32.totalorder %s18, 1
    %p78 = por %p76, %p77
    %p79 = scmp.ne.s32.totalorder %s70, %s71
    %p80 = scmp.eq.s32.totalorder %s18, 0
    %p81 = por %p79, %p80
    %p82 = scmp.ne.s32.totalorder %s70, %s71
    %p83 = scmp.eq.s32.totalorder %s19, 1
    %p84 = por %p82, %p83
    %p86 = scmp.ne.s32.totalorder %s71, %s85
    %p87 = scmp.eq.s32.totalorder %s19, 0
    %p88 = por %p86, %p87
    %s90 = sadd.s32 %s89, 1
    %p93 = scmp.eq.s32.totalorder %s13, 1
    %p94 = scmp.ne.s32.totalorder %s89, %s91
    %p95 = scmp.eq.s32.totalorder %s13, 0
    %p96 = por %p94, %p95
    %p97 = scmp.ne.s32.totalorder %s89, %s91
    %p98 = scmp.eq.s32.totalorder %s18, 1
    %p99 = por %p97, %p98
    %p100 = scmp.ne.s32.totalorder %s91, %s92
    %p101 = scmp.eq.s32.totalorder %s18, 0
    %p102 = por %p100, %p101
    %p103 = scmp.ne.s32.totalorder %s91, %s92
    %p104 = scmp.eq.s32.totalorder %s19, 1
    %p105 = por %p103, %p104
    %p107 = scmp.ne.s32.totalorder %s92, %s106
    %p108 = scmp.eq.s32.totalorder %s19, 0
    %p109 = por %p107, %p108
    %s111 = sadd.s32 %s110, 1
    %p114 = scmp.eq.s32.totalorder %s13, 1
    %p115 = scmp.ne.s32.totalorder %s110, %s112
    %p116 = scmp.eq.s32.totalorder %s13, 0
    %p117 = por %p115, %p116
    %p118 = scmp.ne.s32.totalorder %s110, %s112
    %p119 = scmp.eq.s32.totalorder %s18, 1
    %p120 = por %p118, %p119
    %p121 = scmp.ne.s32.totalorder %s112, %s113
    %p122 = scmp.eq.s32.totalorder %s18, 0
    %p123 = por %p121, %p122
    %p124 = scmp.ne.s32.totalorder %s112, %s113
    %p125 = scmp.eq.s32.totalorder %s19, 1
    %p126 = por %p124, %p125
    %p128 = scmp.ne.s32.totalorder %s113, %s127
    %p129 = scmp.eq.s32.totalorder %s19, 0
    %p130 = por %p128, %p129
    %s132 = sadd.s32 %s131, 1
    %p135 = scmp.eq.s32.totalorder %s13, 1
    %p136 = scmp.ne.s32.totalorder %s131, %s133
    %p137 = scmp.eq.s32.totalorder %s13, 0
    %p138 = por %p136, %p137
    %p139 = scmp.ne.s32.totalorder %s131, %s133
    %p140 = scmp.eq.s32.totalorder %s18, 1
    %p141 = por %p139, %p140
    %p142 = scmp.ne.s32.totalorder %s133, %s134
    %p143 = scmp.eq.s32.totalorder %s18, 0
    %p144 = por %p142, %p143
    %p145 = scmp.ne.s32.totalorder %s133, %s134
    %p146 = scmp.eq.s32.totalorder %s19, 1
    %p147 = por %p145, %p146
    %p149 = scmp.ne.s32.totalorder %s134, %s148
    %p150 = scmp.eq.s32.totalorder %s19, 0
    %p151 = por %p149, %p150
    %s153 = sadd.s32 %s152, 1
    %p156 = scmp.eq.s32.totalorder %s13, 1
    %p157 = scmp.ne.s32.totalorder %s152, %s154
    %p158 = scmp.eq.s32.totalorder %s13, 0
    %p159 = por %p157, %p158
    %p160 = scmp.ne.s32.totalorder %s152, %s154
    %p161 = scmp.eq.s32.totalorder %s18, 1
    %p162 = por %p160, %p161
    %p163 = scmp.ne.s32.totalorder %s154, %s155
    %p164 = scmp.eq.s32.totalorder %s18, 0
    %p165 = por %p163, %p164
    %p166 = scmp.ne.s32.totalorder %s154, %s155
    %p167 = scmp.eq.s32.totalorder %s19, 1
    %p168 = por %p166, %p167
    %p170 = scmp.ne.s32.totalorder %s155, %s169
    %p171 = scmp.eq.s32.totalorder %s19, 0
    %p172 = por %p170, %p171
    %s173 = ssub.s32 %s13, %s20
    %p174 = scmp.eq.s32.totalorder %s173, 0
    %s176 = sadd.s32 %s175, 1
    %s177 = scalar_select %p174, %s175, %s176
    %p180 = pneg %p174
    %p181 = scmp.eq.s32.totalorder %s13, 1
    %p182 = por %p180, %p181
    %p183 = scmp.ne.s32.totalorder %s175, %s178
    %p184 = scmp.eq.s32.totalorder %s13, 0
    %p185 = por %p183, %p184
    %p186 = scmp.ne.s32.totalorder %s175, %s178
    %p187 = scmp.eq.s32.totalorder %s18, 1
    %p188 = por %p186, %p187
    %p189 = scmp.ne.s32.totalorder %s178, %s179
    %p190 = scmp.eq.s32.totalorder %s18, 0
    %p191 = por %p189, %p190
    %p192 = scmp.ne.s32.totalorder %s178, %s179
    %p193 = scmp.eq.s32.totalorder %s19, 1
    %p194 = por %p192, %p193
    %p196 = scmp.ne.s32.totalorder %s179, %s195
    %p197 = scmp.eq.s32.totalorder %s19, 0
    %p198 = por %p196, %p197
    %p199 = scmp.le.s32.totalorder 1, %s13
    %p200 = scmp.lt.s32.totalorder %s13, 3
    %p201 = pnand %p199, %p200
    %p202 = pneg %p201
    // Predicated region
    $region9: #{discriminator_forward.2} parent=5 // pred_check
      _
    $region10: #{discriminator_forward.2} parent=5 // pred_check_branch
      %204 = sbr.rel (%p201) target = $region12
    $region11: #{discriminator_forward.2} parent=5 // pred_region
      %s205 = ssub.s32 %s13, 1
      // Predicated region
      $region13: #{discriminator_forward.2} parent=11 // pred_check
        %p206 = pneg %p60
      $region14: #{discriminator_forward.2} parent=11 // pred_check_branch
        %208 = sbr.rel (%p206) target = $region16
      $region15: #{discriminator_forward.2} parent=11 // pred_region
        _
      $region16: #{discriminator_forward.2} parent=11 // pred_fallthru
        _
      // Predicated region
      $region17: #{discriminator_forward.2} parent=11 // pred_check
        %p209 = pneg %p81
      $region18: #{discriminator_forward.2} parent=11 // pred_check_branch
        %211 = sbr.rel (%p209) target = $region20
      $region19: #{discriminator_forward.2} parent=11 // pred_region
        _
      $region20: #{discriminator_forward.2} parent=11 // pred_fallthru
        _
      // Predicated region
      $region21: #{discriminator_forward.2} parent=11 // pred_check
        %p212 = pneg %p102
      $region22: #{discriminator_forward.2} parent=11 // pred_check_branch
        %214 = sbr.rel (%p212) target = $region24
      $region23: #{discriminator_forward.2} parent=11 // pred_region
        _
      $region24: #{discriminator_forward.2} parent=11 // pred_fallthru
        _
      // Predicated region
      $region25: #{discriminator_forward.2} parent=11 // pred_check
        %p215 = pneg %p123
      $region26: #{discriminator_forward.2} parent=11 // pred_check_branch
        %217 = sbr.rel (%p215) target = $region28
      $region27: #{discriminator_forward.2} parent=11 // pred_region
        _
      $region28: #{discriminator_forward.2} parent=11 // pred_fallthru
        _
      // Predicated region
      $region29: #{discriminator_forward.2} parent=11 // pred_check
        %p218 = pneg %p144
      $region30: #{discriminator_forward.2} parent=11 // pred_check_branch
        %220 = sbr.rel (%p218) target = $region32
      $region31: #{discriminator_forward.2} parent=11 // pred_region
        _
      $region32: #{discriminator_forward.2} parent=11 // pred_fallthru
        _
      // Predicated region
      $region33: #{discriminator_forward.2} parent=11 // pred_check
        %p221 = pneg %p165
      $region34: #{discriminator_forward.2} parent=11 // pred_check_branch
        %223 = sbr.rel (%p221) target = $region36
      $region35: #{discriminator_forward.2} parent=11 // pred_region
        _
      $region36: #{discriminator_forward.2} parent=11 // pred_fallthru
        _
    $region12: #{discriminator_forward.2} parent=5 // pred_fallthru
      _
    %p224 = scmp.lt.s32.totalorder %s13, 2
    // Predicated region
    $region37: #{discriminator_forward.2} parent=5 // pred_check
      %p225 = pneg %p224
    $region38: #{discriminator_forward.2} parent=5 // pred_check_branch
      %227 = sbr.rel (%p225) target = $region40
    $region39: #{discriminator_forward.2} parent=5 // pred_region
      // Predicated region
      $region41: #{discriminator_forward.2} parent=39 // pred_check
        %p228 = pneg %p33
      $region42: #{discriminator_forward.2} parent=39 // pred_check_branch
        %230 = sbr.rel (%p228) target = $region44
      $region43: #{discriminator_forward.2} parent=39 // pred_region
        %p231 = scmp.lt.s32.totalorder %s13, 1
        %s232 = scalar_select %p231, %s13, 1
        %s233 = smul.addr %s232, 16
        %s234 = smul.addr %s233, 8
        %s235 = scalar_lea.vmem %s0, %s234
      $region44: #{discriminator_forward.2} parent=39 // pred_fallthru
        _
    $region40: #{discriminator_forward.2} parent=5 // pred_fallthru
      _
    %p236 = scmp.le.s32.totalorder 1, %s13
    %p237 = scmp.lt.s32.totalorder %s13, 3
    %p238 = pnand %p236, %p237
    %p239 = pneg %p238
    // Predicated region
    $region45: #{discriminator_forward.2} parent=5 // pred_check
      _
    $region46: #{discriminator_forward.2} parent=5 // pred_check_branch
      %241 = sbr.rel (%p238) target = $region48
    $region47: #{discriminator_forward.2} parent=5 // pred_region
      %s242 = ssub.s32 %s13, 1
      %p243 = scmp.lt.s32.totalorder %s18, 1
      %s244 = scalar_select %p243, %s18, 1
      %s245 = smul.addr %s244, 16
      %s246 = smul.addr %s245, 8
      %s247 = scalar_lea.vmem %s0, %s246
      %p248 = pneg %p39
      %p249 = pneg %p36
      %p250 = pneg %p60
      %p251 = pneg %p57
      %p252 = pneg %p81
      %p253 = pneg %p78
      %p254 = pneg %p102
      %p255 = pneg %p99
      %p256 = pneg %p123
      %p257 = pneg %p120
      %p258 = pneg %p144
      %p259 = pneg %p141
      %p260 = pneg %p165
      %p261 = pneg %p162
      %p262 = pneg %p191
      %p263 = pneg %p188
      %p264 = scmp.lt.s32.totalorder %s18, 1
      %s265 = scalar_select %p264, %s18, 1
      %s266 = smul.addr %s265, 64
      %s267 = smul.addr %s266, 8
      %s268 = scalar_lea.vmem %s7, %s267
      %p269 = scmp.lt.s32.totalorder %s18, 1
      %s270 = scalar_select %p269, %s18, 1
      %s271 = smul.addr %s270, 16
      %s272 = smul.addr %s271, 8
      %s273 = scalar_lea.vmem %s0, %s272
      %p274 = scmp.lt.s32.totalorder %s18, 1
      %s275 = scalar_select %p274, %s18, 1
      %s276 = smul.addr %s275, 64
      %s277 = smul.addr %s276, 8
      %s278 = scalar_lea.vmem %s7, %s277
      %v279 = vld [vmem:[%s273] sm:$0xff]
      %v280 = vld [vmem:[%s273 + $0x8] sm:$0xff]
      %v281 = vld [vmem:[%s273 + $0x10] sm:$0xff]
      %v282 = vld [vmem:[%s273 + $0x18] sm:$0xff]
      %v283 = vld [vmem:[%s273 + $0x20] sm:$0xff]
      %v284 = vld [vmem:[%s273 + $0x28] sm:$0xff]
      %v285 = vld [vmem:[%s273 + $0x30] sm:$0xff]
      %v286 = vld [vmem:[%s273 + $0x38] sm:$0xff]
      %v287 = vld [vmem:[%s273 + $0x40] sm:$0xff]
      %v288 = vld [vmem:[%s273 + $0x48] sm:$0xff]
      %v289 = vld [vmem:[%s273 + $0x50] sm:$0xff]
      %v290 = vld [vmem:[%s273 + $0x58] sm:$0xff]
      %v291 = vld [vmem:[%s273 + $0x60] sm:$0xff]
      %v292 = vld [vmem:[%s273 + $0x68] sm:$0xff]
      %v293 = vld [vmem:[%s273 + $0x70] sm:$0xff]
      %v294 = vld [vmem:[%s273 + $0x78] sm:$0xff]
      %v295 = vld [vmem:[%s1] sm:$0x7]
      %v296 = vld [vmem:[%s2] sm:$0x1]
      %v298 = vperm.slane %v296, 0
      %vm300 = vcmask 23552
      %v302 = vsel %vm300, %v279, 0
      %v305 = vsel %vm300, %v280, 0
      %v308 = vsel %vm300, %v281, 0
      %v311 = vsel %vm300, %v282, 0
      %v314 = vsel %vm300, %v283, 0
      %v317 = vsel %vm300, %v284, 0
      %v320 = vsel %vm300, %v285, 0
      %v323 = vsel %vm300, %v286, 0
      %v326 = vsel %vm300, %v287, 0
      %v329 = vsel %vm300, %v288, 0
      %v332 = vsel %vm300, %v289, 0
      %v335 = vsel %vm300, %v290, 0
      %v338 = vsel %vm300, %v291, 0
      %v341 = vsel %vm300, %v292, 0
      %v344 = vsel %vm300, %v293, 0
      %v347 = vsel %vm300, %v294, 0
      %vm349 = vcmask 1042432
      %v351 = vsel %vm349, %v295, 0
      %353 = vmatpush.msra.mxu0 0.0
      %354 = vmatpush.msra.mxu0 0.0
      %355 = vmatpush.msra.mxu0 0.0
      %356 = vmatpush.msra.mxu0 0.0
      %357 = vmatpush.msra.mxu0 0.0
      %358 = vmatpush.msra.mxu0 0.0
      %359 = vmatpush.msra.mxu0 0.0
      %360 = vmatpush.msra.mxu0 0.0
      %361 = vmatpush.msra.mxu0 0.0
      %362 = vmatpush.msra.mxu0 0.0
      %363 = vmatpush.msra.mxu0 0.0
      %364 = vmatpush.msra.mxu0 0.0
      %365 = vmatpush.msra.mxu0 0.0
      %366 = vmatpush.msra.mxu0 0.0
      %367 = vmatpush.msra.mxu0 0.0
      %368 = vmatpush.msra.mxu0 %v351
      %369 = vmatmul.f32.gmra.mxu0 %v302
      %v370 = vpop.f32.mrf.mxu0
      %v371 = vadd.f32 %v298, %v370
      %372 = vmatmul.f32.gmra.mxu0 %v305
      %v373 = vpop.f32.mrf.mxu0
      %v374 = vadd.f32 %v298, %v373
      %375 = vmatmul.f32.gmra.mxu0 %v308
      %v376 = vpop.f32.mrf.mxu0
      %v377 = vadd.f32 %v298, %v376
      %378 = vmatmul.f32.gmra.mxu0 %v311
      %v379 = vpop.f32.mrf.mxu0
      %v380 = vadd.f32 %v298, %v379
      %381 = vmatmul.f32.gmra.mxu0 %v314
      %v382 = vpop.f32.mrf.mxu0
      %v383 = vadd.f32 %v298, %v382
      %384 = vmatmul.f32.gmra.mxu0 %v317
      %v385 = vpop.f32.mrf.mxu0
      %v386 = vadd.f32 %v298, %v385
      %387 = vmatmul.f32.gmra.mxu0 %v320
      %v388 = vpop.f32.mrf.mxu0
      %v389 = vadd.f32 %v298, %v388
      %390 = vmatmul.f32.gmra.mxu0 %v323
      %v391 = vpop.f32.mrf.mxu0
      %v392 = vadd.f32 %v298, %v391
      %393 = vmatmul.f32.gmra.mxu0 %v326
      %v394 = vpop.f32.mrf.mxu0
      %v395 = vadd.f32 %v298, %v394
      %396 = vmatmul.f32.gmra.mxu0 %v329
      %v397 = vpop.f32.mrf.mxu0
      %v398 = vadd.f32 %v298, %v397
      %399 = vmatmul.f32.gmra.mxu0 %v332
      %v400 = vpop.f32.mrf.mxu0
      %v401 = vadd.f32 %v298, %v400
      %402 = vmatmul.f32.gmra.mxu0 %v335
      %v403 = vpop.f32.mrf.mxu0
      %v404 = vadd.f32 %v298, %v403
      %405 = vmatmul.f32.gmra.mxu0 %v338
      %v406 = vpop.f32.mrf.mxu0
      %v407 = vadd.f32 %v298, %v406
      %408 = vmatmul.f32.gmra.mxu0 %v341
      %v409 = vpop.f32.mrf.mxu0
      %v410 = vadd.f32 %v298, %v409
      %411 = vmatmul.f32.gmra.mxu0 %v344
      %v412 = vpop.f32.mrf.mxu0
      %v413 = vadd.f32 %v298, %v412
      %414 = vmatmul.f32.gmra.mxu0 %v347
      %v415 = vpop.f32.mrf.mxu0
      %v416 = vadd.f32 %v298, %v415
      %417 = vdwg.mxu0
      %v418 = vmul.f32 %v371, 0.2
      %v419 = vmul.f32 %v374, 0.2
      %v420 = vmul.f32 %v377, 0.2
      %v421 = vmul.f32 %v380, 0.2
      %v422 = vmul.f32 %v383, 0.2
      %v423 = vmul.f32 %v386, 0.2
      %v424 = vmul.f32 %v389, 0.2
      %v425 = vmul.f32 %v392, 0.2
      %v426 = vmul.f32 %v395, 0.2
      %v427 = vmul.f32 %v398, 0.2
      %v428 = vmul.f32 %v401, 0.2
      %v429 = vmul.f32 %v404, 0.2
      %v430 = vmul.f32 %v407, 0.2
      %v431 = vmul.f32 %v410, 0.2
      %v432 = vmul.f32 %v413, 0.2
      %v433 = vmul.f32 %v416, 0.2
      %v434 = vmax.f32 %v371, %v418
      %v435 = vmax.f32 %v374, %v419
      %v436 = vmax.f32 %v377, %v420
      %v437 = vmax.f32 %v380, %v421
      %v438 = vmax.f32 %v383, %v422
      %v439 = vmax.f32 %v386, %v423
      %v440 = vmax.f32 %v389, %v424
      %v441 = vmax.f32 %v392, %v425
      %v442 = vmax.f32 %v395, %v426
      %v443 = vmax.f32 %v398, %v427
      %v444 = vmax.f32 %v401, %v428
      %v445 = vmax.f32 %v404, %v429
      %v446 = vmax.f32 %v407, %v430
      %v447 = vmax.f32 %v410, %v431
      %v448 = vmax.f32 %v413, %v432
      %v449 = vmax.f32 %v416, %v433
      %v450 = vld [vmem:[%s3] sm:$0xff]
      %v451 = vld [vmem:[%s3 + $0x8] sm:$0xff]
      %v452 = vld [vmem:[%s3 + $0x10] sm:$0xff]
      %v453 = vld [vmem:[%s3 + $0x18] sm:$0xff]
      %v454 = vld [vmem:[%s3 + $0x20] sm:$0xff]
      %v455 = vld [vmem:[%s3 + $0x28] sm:$0xff]
      %v456 = vld [vmem:[%s3 + $0x30] sm:$0xff]
      %v457 = vld [vmem:[%s3 + $0x38] sm:$0xff]
      %v458 = vld [vmem:[%s4] sm:$0x1]
      %v460 = vperm.slane %v458, 0
      %vm462 = vcmask 523264
      %v464 = vsel %vm462, %v434, 0
      %v467 = vsel %vm462, %v435, 0
      %v470 = vsel %vm462, %v436, 0
      %v473 = vsel %vm462, %v437, 0
      %v476 = vsel %vm462, %v438, 0
      %v479 = vsel %vm462, %v439, 0
      %v482 = vsel %vm462, %v440, 0
      %v485 = vsel %vm462, %v441, 0
      %v488 = vsel %vm462, %v442, 0
      %v491 = vsel %vm462, %v443, 0
      %v494 = vsel %vm462, %v444, 0
      %v497 = vsel %vm462, %v445, 0
      %v500 = vsel %vm462, %v446, 0
      %v503 = vsel %vm462, %v447, 0
      %v506 = vsel %vm462, %v448, 0
      %v509 = vsel %vm462, %v449, 0
      %511 = vmatpush.msra.mxu0 0.0
      %512 = vmatpush.msra.mxu0 0.0
      %513 = vmatpush.msra.mxu0 0.0
      %514 = vmatpush.msra.mxu0 0.0
      %515 = vmatpush.msra.mxu0 0.0
      %516 = vmatpush.msra.mxu0 0.0
      %517 = vmatpush.msra.mxu0 0.0
      %518 = vmatpush.msra.mxu0 0.0
      %519 = vmatpush.msra.mxu0 %v457
      %520 = vmatpush.msra.mxu0 %v456
      %521 = vmatpush.msra.mxu0 %v455
      %522 = vmatpush.msra.mxu0 %v454
      %523 = vmatpush.msra.mxu0 %v453
      %524 = vmatpush.msra.mxu0 %v452
      %525 = vmatpush.msra.mxu0 %v451
      %526 = vmatpush.msra.mxu0 %v450
      %527 = vmatmul.f32.gmra.mxu0 %v464
      %v528 = vpop.f32.mrf.mxu0
      %v529 = vadd.f32 %v460, %v528
      %530 = vmatmul.f32.gmra.mxu0 %v467
      %v531 = vpop.f32.mrf.mxu0
      %v532 = vadd.f32 %v460, %v531
      %533 = vmatmul.f32.gmra.mxu0 %v470
      %v534 = vpop.f32.mrf.mxu0
      %v535 = vadd.f32 %v460, %v534
      %536 = vmatmul.f32.gmra.mxu0 %v473
      %v537 = vpop.f32.mrf.mxu0
      %v538 = vadd.f32 %v460, %v537
      %539 = vmatmul.f32.gmra.mxu0 %v476
      %v540 = vpop.f32.mrf.mxu0
      %v541 = vadd.f32 %v460, %v540
      %542 = vmatmul.f32.gmra.mxu0 %v479
      %v543 = vpop.f32.mrf.mxu0
      %v544 = vadd.f32 %v460, %v543
      %545 = vmatmul.f32.gmra.mxu0 %v482
      %v546 = vpop.f32.mrf.mxu0
      %v547 = vadd.f32 %v460, %v546
      %548 = vmatmul.f32.gmra.mxu0 %v485
      %v549 = vpop.f32.mrf.mxu0
      %v550 = vadd.f32 %v460, %v549
      %551 = vmatmul.f32.gmra.mxu0 %v488
      %v552 = vpop.f32.mrf.mxu0
      %v553 = vadd.f32 %v460, %v552
      %554 = vmatmul.f32.gmra.mxu0 %v491
      %v555 = vpop.f32.mrf.mxu0
      %v556 = vadd.f32 %v460, %v555
      %557 = vmatmul.f32.gmra.mxu0 %v494
      %v558 = vpop.f32.mrf.mxu0
      %v559 = vadd.f32 %v460, %v558
      %560 = vmatmul.f32.gmra.mxu0 %v497
      %v561 = vpop.f32.mrf.mxu0
      %v562 = vadd.f32 %v460, %v561
      %563 = vmatmul.f32.gmra.mxu0 %v500
      %v564 = vpop.f32.mrf.mxu0
      %v565 = vadd.f32 %v460, %v564
      %566 = vmatmul.f32.gmra.mxu0 %v503
      %v567 = vpop.f32.mrf.mxu0
      %v568 = vadd.f32 %v460, %v567
      %569 = vmatmul.f32.gmra.mxu0 %v506
      %v570 = vpop.f32.mrf.mxu0
      %v571 = vadd.f32 %v460, %v570
      %572 = vmatmul.f32.gmra.mxu0 %v509
      %v573 = vpop.f32.mrf.mxu0
      %v574 = vadd.f32 %v460, %v573
      %575 = vdwg.mxu0
      %v576 = vmul.f32 %v529, 0.2
      %v577 = vmul.f32 %v532, 0.2
      %v578 = vmul.f32 %v535, 0.2
      %v579 = vmul.f32 %v538, 0.2
      %v580 = vmul.f32 %v541, 0.2
      %v581 = vmul.f32 %v544, 0.2
      %v582 = vmul.f32 %v547, 0.2
      %v583 = vmul.f32 %v550, 0.2
      %v584 = vmul.f32 %v553, 0.2
      %v585 = vmul.f32 %v556, 0.2
      %v586 = vmul.f32 %v559, 0.2
      %v587 = vmul.f32 %v562, 0.2
      %v588 = vmul.f32 %v565, 0.2
      %v589 = vmul.f32 %v568, 0.2
      %v590 = vmul.f32 %v571, 0.2
      %v591 = vmul.f32 %v574, 0.2
      %v592 = vmax.f32 %v529, %v576
      %v593 = vmax.f32 %v532, %v577
      %v594 = vmax.f32 %v535, %v578
      %v595 = vmax.f32 %v538, %v579
      %v596 = vmax.f32 %v541, %v580
      %v597 = vmax.f32 %v544, %v581
      %v598 = vmax.f32 %v547, %v582
      %v599 = vmax.f32 %v550, %v583
      %v600 = vmax.f32 %v553, %v584
      %v601 = vmax.f32 %v556, %v585
      %v602 = vmax.f32 %v559, %v586
      %v603 = vmax.f32 %v562, %v587
      %v604 = vmax.f32 %v565, %v588
      %v605 = vmax.f32 %v568, %v589
      %v606 = vmax.f32 %v571, %v590
      %v607 = vmax.f32 %v574, %v591
      %v608 = vld [vmem:[%s5] sm:$0xff]
      %v609 = vld [vmem:[%s5 + $0x8] sm:$0xff]
      %v610 = vld [vmem:[%s5 + $0x10] sm:$0xff]
      %v611 = vld [vmem:[%s5 + $0x18] sm:$0xff]
      %v612 = vld [vmem:[%s5 + $0x20] sm:$0xff]
      %v613 = vld [vmem:[%s5 + $0x28] sm:$0xff]
      %v614 = vld [vmem:[%s5 + $0x30] sm:$0xff]
      %v615 = vld [vmem:[%s5 + $0x38] sm:$0xff]
      %v616 = vld [vmem:[%s5 + $0x40] sm:$0xff]
      %v617 = vld [vmem:[%s5 + $0x48] sm:$0xff]
      %v618 = vld [vmem:[%s5 + $0x50] sm:$0xff]
      %v619 = vld [vmem:[%s5 + $0x58] sm:$0xff]
      %v620 = vld [vmem:[%s5 + $0x60] sm:$0xff]
      %v621 = vld [vmem:[%s5 + $0x68] sm:$0xff]
      %v622 = vld [vmem:[%s5 + $0x70] sm:$0xff]
      %v623 = vld [vmem:[%s5 + $0x78] sm:$0xff]
      %v624 = vld [vmem:[%s5 + $0x80] sm:$0xff]
      %v625 = vld [vmem:[%s5 + $0x88] sm:$0xff]
      %v626 = vld [vmem:[%s5 + $0x90] sm:$0xff]
      %v627 = vld [vmem:[%s5 + $0x98] sm:$0xff]
      %v628 = vld [vmem:[%s5 + $0xa0] sm:$0xff]
      %v629 = vld [vmem:[%s5 + $0xa8] sm:$0xff]
      %v630 = vld [vmem:[%s5 + $0xb0] sm:$0xff]
      %v631 = vld [vmem:[%s5 + $0xb8] sm:$0xff]
      %v632 = vld [vmem:[%s5 + $0xc0] sm:$0xff]
      %v633 = vld [vmem:[%s5 + $0xc8] sm:$0xff]
      %v634 = vld [vmem:[%s5 + $0xd0] sm:$0xff]
      %v635 = vld [vmem:[%s5 + $0xd8] sm:$0xff]
      %v636 = vld [vmem:[%s5 + $0xe0] sm:$0xff]
      %v637 = vld [vmem:[%s5 + $0xe8] sm:$0xff]
      %v638 = vld [vmem:[%s5 + $0xf0] sm:$0xff]
      %v639 = vld [vmem:[%s5 + $0xf8] sm:$0xff]
      %v640 = vld [vmem:[%s5 + $0x100] sm:$0xff]
      %v641 = vld [vmem:[%s5 + $0x108] sm:$0xff]
      %v642 = vld [vmem:[%s5 + $0x110] sm:$0xff]
      %v643 = vld [vmem:[%s5 + $0x118] sm:$0xff]
      %v644 = vld [vmem:[%s5 + $0x120] sm:$0xff]
      %v645 = vld [vmem:[%s5 + $0x128] sm:$0xff]
      %v646 = vld [vmem:[%s5 + $0x130] sm:$0xff]
      %v647 = vld [vmem:[%s5 + $0x138] sm:$0xff]
      %v648 = vld [vmem:[%s5 + $0x140] sm:$0xff]
      %v649 = vld [vmem:[%s5 + $0x148] sm:$0xff]
      %v650 = vld [vmem:[%s5 + $0x150] sm:$0xff]
      %v651 = vld [vmem:[%s5 + $0x158] sm:$0xff]
      %v652 = vld [vmem:[%s5 + $0x160] sm:$0xff]
      %v653 = vld [vmem:[%s5 + $0x168] sm:$0xff]
      %v654 = vld [vmem:[%s5 + $0x170] sm:$0xff]
      %v655 = vld [vmem:[%s5 + $0x178] sm:$0xff]
      %v656 = vld [vmem:[%s5 + $0x180] sm:$0xff]
      %v657 = vld [vmem:[%s5 + $0x188] sm:$0xff]
      %v658 = vld [vmem:[%s5 + $0x190] sm:$0xff]
      %v659 = vld [vmem:[%s5 + $0x198] sm:$0xff]
      %v660 = vld [vmem:[%s5 + $0x1a0] sm:$0xff]
      %v661 = vld [vmem:[%s5 + $0x1a8] sm:$0xff]
      %v662 = vld [vmem:[%s5 + $0x1b0] sm:$0xff]
      %v663 = vld [vmem:[%s5 + $0x1b8] sm:$0xff]
      %v664 = vld [vmem:[%s5 + $0x1c0] sm:$0xff]
      %v665 = vld [vmem:[%s5 + $0x1c8] sm:$0xff]
      %v666 = vld [vmem:[%s5 + $0x1d0] sm:$0xff]
      %v667 = vld [vmem:[%s5 + $0x1d8] sm:$0xff]
      %v668 = vld [vmem:[%s5 + $0x1e0] sm:$0xff]
      %v669 = vld [vmem:[%s5 + $0x1e8] sm:$0xff]
      %v670 = vld [vmem:[%s5 + $0x1f0] sm:$0xff]
      %v671 = vld [vmem:[%s5 + $0x1f8] sm:$0xff]
      %v672 = vld [vmem:[%s6] sm:$0xf]
      %v674 = vperm.slane %v672, 0
      %v675 = vperm.slane %v672, 1
      %v676 = vperm.slane %v672, 2
      %v677 = vperm.slane %v672, 3
      %682 = vmatpush.msra.mxu0 %v668
      %683 = vmatpush.msra.mxu0 %v664
      %684 = vmatpush.msra.mxu0 %v660
      %685 = vmatpush.msra.mxu0 %v656
      %686 = vmatpush.msra.mxu0 %v652
      %687 = vmatpush.msra.mxu0 %v648
      %688 = vmatpush.msra.mxu0 %v644
      %689 = vmatpush.msra.mxu0 %v640
      %690 = vmatpush.msra.mxu0 %v636
      %691 = vmatpush.msra.mxu0 %v632
      %692 = vmatpush.msra.mxu0 %v628
      %693 = vmatpush.msra.mxu0 %v624
      %694 = vmatpush.msra.mxu0 %v620
      %695 = vmatpush.msra.mxu0 %v616
      %696 = vmatpush.msra.mxu0 %v612
      %697 = vmatpush.msra.mxu0 %v608
      %698 = vmatmul.f32.gmra.mxu0 %v592
      %v699 = vpop.f32.mrf.mxu0
      %v700 = vadd.f32 %v674, %v699
      %701 = vmatmul.f32.gmra.mxu0 %v593
      %v702 = vpop.f32.mrf.mxu0
      %v703 = vadd.f32 %v674, %v702
      %704 = vmatmul.f32.gmra.mxu0 %v594
      %v705 = vpop.f32.mrf.mxu0
      %v706 = vadd.f32 %v674, %v705
      %707 = vmatmul.f32.gmra.mxu0 %v595
      %v708 = vpop.f32.mrf.mxu0
      %v709 = vadd.f32 %v674, %v708
      %710 = vmatmul.f32.gmra.mxu0 %v596
      %v711 = vpop.f32.mrf.mxu0
      %v712 = vadd.f32 %v674, %v711
      %713 = vmatmul.f32.gmra.mxu0 %v597
      %v714 = vpop.f32.mrf.mxu0
      %v715 = vadd.f32 %v674, %v714
      %716 = vmatmul.f32.gmra.mxu0 %v598
      %v717 = vpop.f32.mrf.mxu0
      %v718 = vadd.f32 %v674, %v717
      %719 = vmatmul.f32.gmra.mxu0 %v599
      %v720 = vpop.f32.mrf.mxu0
      %v721 = vadd.f32 %v674, %v720
      %722 = vmatmul.f32.gmra.mxu0 %v600
      %v723 = vpop.f32.mrf.mxu0
      %v724 = vadd.f32 %v674, %v723
      %725 = vmatmul.f32.gmra.mxu0 %v601
      %v726 = vpop.f32.mrf.mxu0
      %v727 = vadd.f32 %v674, %v726
      %728 = vmatmul.f32.gmra.mxu0 %v602
      %v729 = vpop.f32.mrf.mxu0
      %v730 = vadd.f32 %v674, %v729
      %731 = vmatmul.f32.gmra.mxu0 %v603
      %v732 = vpop.f32.mrf.mxu0
      %v733 = vadd.f32 %v674, %v732
      %734 = vmatmul.f32.gmra.mxu0 %v604
      %v735 = vpop.f32.mrf.mxu0
      %v736 = vadd.f32 %v674, %v735
      %737 = vmatmul.f32.gmra.mxu0 %v605
      %v738 = vpop.f32.mrf.mxu0
      %v739 = vadd.f32 %v674, %v738
      %740 = vmatmul.f32.gmra.mxu0 %v606
      %v741 = vpop.f32.mrf.mxu0
      %v742 = vadd.f32 %v674, %v741
      %743 = vmatmul.f32.gmra.mxu0 %v607
      %v744 = vpop.f32.mrf.mxu0
      %v745 = vadd.f32 %v674, %v744
      %746 = vdwg.mxu0
      %747 = vmatpush.msra.mxu0 %v669
      %748 = vmatpush.msra.mxu0 %v665
      %749 = vmatpush.msra.mxu0 %v661
      %750 = vmatpush.msra.mxu0 %v657
      %751 = vmatpush.msra.mxu0 %v653
      %752 = vmatpush.msra.mxu0 %v649
      %753 = vmatpush.msra.mxu0 %v645
      %754 = vmatpush.msra.mxu0 %v641
      %755 = vmatpush.msra.mxu0 %v637
      %756 = vmatpush.msra.mxu0 %v633
      %757 = vmatpush.msra.mxu0 %v629
      %758 = vmatpush.msra.mxu0 %v625
      %759 = vmatpush.msra.mxu0 %v621
      %760 = vmatpush.msra.mxu0 %v617
      %761 = vmatpush.msra.mxu0 %v613
      %762 = vmatpush.msra.mxu0 %v609
      %763 = vmatmul.f32.gmra.mxu0 %v592
      %v764 = vpop.f32.mrf.mxu0
      %v765 = vadd.f32 %v675, %v764
      %766 = vmatmul.f32.gmra.mxu0 %v593
      %v767 = vpop.f32.mrf.mxu0
      %v768 = vadd.f32 %v675, %v767
      %769 = vmatmul.f32.gmra.mxu0 %v594
      %v770 = vpop.f32.mrf.mxu0
      %v771 = vadd.f32 %v675, %v770
      %772 = vmatmul.f32.gmra.mxu0 %v595
      %v773 = vpop.f32.mrf.mxu0
      %v774 = vadd.f32 %v675, %v773
      %775 = vmatmul.f32.gmra.mxu0 %v596
      %v776 = vpop.f32.mrf.mxu0
      %v777 = vadd.f32 %v675, %v776
      %778 = vmatmul.f32.gmra.mxu0 %v597
      %v779 = vpop.f32.mrf.mxu0
      %v780 = vadd.f32 %v675, %v779
      %781 = vmatmul.f32.gmra.mxu0 %v598
      %v782 = vpop.f32.mrf.mxu0
      %v783 = vadd.f32 %v675, %v782
      %784 = vmatmul.f32.gmra.mxu0 %v599
      %v785 = vpop.f32.mrf.mxu0
      %v786 = vadd.f32 %v675, %v785
      %787 = vmatmul.f32.gmra.mxu0 %v600
      %v788 = vpop.f32.mrf.mxu0
      %v789 = vadd.f32 %v675, %v788
      %790 = vmatmul.f32.gmra.mxu0 %v601
      %v791 = vpop.f32.mrf.mxu0
      %v792 = vadd.f32 %v675, %v791
      %793 = vmatmul.f32.gmra.mxu0 %v602
      %v794 = vpop.f32.mrf.mxu0
      %v795 = vadd.f32 %v675, %v794
      %796 = vmatmul.f32.gmra.mxu0 %v603
      %v797 = vpop.f32.mrf.mxu0
      %v798 = vadd.f32 %v675, %v797
      %799 = vmatmul.f32.gmra.mxu0 %v604
      %v800 = vpop.f32.mrf.mxu0
      %v801 = vadd.f32 %v675, %v800
      %802 = vmatmul.f32.gmra.mxu0 %v605
      %v803 = vpop.f32.mrf.mxu0
      %v804 = vadd.f32 %v675, %v803
      %805 = vmatmul.f32.gmra.mxu0 %v606
      %v806 = vpop.f32.mrf.mxu0
      %v807 = vadd.f32 %v675, %v806
      %808 = vmatmul.f32.gmra.mxu0 %v607
      %v809 = vpop.f32.mrf.mxu0
      %v810 = vadd.f32 %v675, %v809
      %811 = vdwg.mxu0
      %812 = vmatpush.msra.mxu0 %v670
      %813 = vmatpush.msra.mxu0 %v666
      %814 = vmatpush.msra.mxu0 %v662
      %815 = vmatpush.msra.mxu0 %v658
      %816 = vmatpush.msra.mxu0 %v654
      %817 = vmatpush.msra.mxu0 %v650
      %818 = vmatpush.msra.mxu0 %v646
      %819 = vmatpush.msra.mxu0 %v642
      %820 = vmatpush.msra.mxu0 %v638
      %821 = vmatpush.msra.mxu0 %v634
      %822 = vmatpush.msra.mxu0 %v630
      %823 = vmatpush.msra.mxu0 %v626
      %824 = vmatpush.msra.mxu0 %v622
      %825 = vmatpush.msra.mxu0 %v618
      %826 = vmatpush.msra.mxu0 %v614
      %827 = vmatpush.msra.mxu0 %v610
      %828 = vmatmul.f32.gmra.mxu0 %v592
      %v829 = vpop.f32.mrf.mxu0
      %v830 = vadd.f32 %v676, %v829
      %831 = vmatmul.f32.gmra.mxu0 %v593
      %v832 = vpop.f32.mrf.mxu0
      %v833 = vadd.f32 %v676, %v832
      %834 = vmatmul.f32.gmra.mxu0 %v594
      %v835 = vpop.f32.mrf.mxu0
      %v836 = vadd.f32 %v676, %v835
      %837 = vmatmul.f32.gmra.mxu0 %v595
      %v838 = vpop.f32.mrf.mxu0
      %v839 = vadd.f32 %v676, %v838
      %840 = vmatmul.f32.gmra.mxu0 %v596
      %v841 = vpop.f32.mrf.mxu0
      %v842 = vadd.f32 %v676, %v841
      %843 = vmatmul.f32.gmra.mxu0 %v597
      %v844 = vpop.f32.mrf.mxu0
      %v845 = vadd.f32 %v676, %v844
      %846 = vmatmul.f32.gmra.mxu0 %v598
      %v847 = vpop.f32.mrf.mxu0
      %v848 = vadd.f32 %v676, %v847
      %849 = vmatmul.f32.gmra.mxu0 %v599
      %v850 = vpop.f32.mrf.mxu0
      %v851 = vadd.f32 %v676, %v850
      %852 = vmatmul.f32.gmra.mxu0 %v600
      %v853 = vpop.f32.mrf.mxu0
      %v854 = vadd.f32 %v676, %v853
      %855 = vmatmul.f32.gmra.mxu0 %v601
      %v856 = vpop.f32.mrf.mxu0
      %v857 = vadd.f32 %v676, %v856
      %858 = vmatmul.f32.gmra.mxu0 %v602
      %v859 = vpop.f32.mrf.mxu0
      %v860 = vadd.f32 %v676, %v859
      %861 = vmatmul.f32.gmra.mxu0 %v603
      %v862 = vpop.f32.mrf.mxu0
      %v863 = vadd.f32 %v676, %v862
      %864 = vmatmul.f32.gmra.mxu0 %v604
      %v865 = vpop.f32.mrf.mxu0
      %v866 = vadd.f32 %v676, %v865
      %867 = vmatmul.f32.gmra.mxu0 %v605
      %v868 = vpop.f32.mrf.mxu0
      %v869 = vadd.f32 %v676, %v868
      %870 = vmatmul.f32.gmra.mxu0 %v606
      %v871 = vpop.f32.mrf.mxu0
      %v872 = vadd.f32 %v676, %v871
      %873 = vmatmul.f32.gmra.mxu0 %v607
      %v874 = vpop.f32.mrf.mxu0
      %v875 = vadd.f32 %v676, %v874
      %876 = vdwg.mxu0
      %877 = vmatpush.msra.mxu0 %v671
      %878 = vmatpush.msra.mxu0 %v667
      %879 = vmatpush.msra.mxu0 %v663
      %880 = vmatpush.msra.mxu0 %v659
      %881 = vmatpush.msra.mxu0 %v655
      %882 = vmatpush.msra.mxu0 %v651
      %883 = vmatpush.msra.mxu0 %v647
      %884 = vmatpush.msra.mxu0 %v643
      %885 = vmatpush.msra.mxu0 %v639
      %886 = vmatpush.msra.mxu0 %v635
      %887 = vmatpush.msra.mxu0 %v631
      %888 = vmatpush.msra.mxu0 %v627
      %889 = vmatpush.msra.mxu0 %v623
      %890 = vmatpush.msra.mxu0 %v619
      %891 = vmatpush.msra.mxu0 %v615
      %892 = vmatpush.msra.mxu0 %v611
      %893 = vmatmul.f32.gmra.mxu0 %v592
      %v894 = vpop.f32.mrf.mxu0
      %v895 = vadd.f32 %v677, %v894
      %896 = vmatmul.f32.gmra.mxu0 %v593
      %v897 = vpop.f32.mrf.mxu0
      %v898 = vadd.f32 %v677, %v897
      %899 = vmatmul.f32.gmra.mxu0 %v594
      %v900 = vpop.f32.mrf.mxu0
      %v901 = vadd.f32 %v677, %v900
      %902 = vmatmul.f32.gmra.mxu0 %v595
      %v903 = vpop.f32.mrf.mxu0
      %v904 = vadd.f32 %v677, %v903
      %905 = vmatmul.f32.gmra.mxu0 %v596
      %v906 = vpop.f32.mrf.mxu0
      %v907 = vadd.f32 %v677, %v906
      %908 = vmatmul.f32.gmra.mxu0 %v597
      %v909 = vpop.f32.mrf.mxu0
      %v910 = vadd.f32 %v677, %v909
      %911 = vmatmul.f32.gmra.mxu0 %v598
      %v912 = vpop.f32.mrf.mxu0
      %v913 = vadd.f32 %v677, %v912
      %914 = vmatmul.f32.gmra.mxu0 %v599
      %v915 = vpop.f32.mrf.mxu0
      %v916 = vadd.f32 %v677, %v915
      %917 = vmatmul.f32.gmra.mxu0 %v600
      %v918 = vpop.f32.mrf.mxu0
      %v919 = vadd.f32 %v677, %v918
      %920 = vmatmul.f32.gmra.mxu0 %v601
      %v921 = vpop.f32.mrf.mxu0
      %v922 = vadd.f32 %v677, %v921
      %923 = vmatmul.f32.gmra.mxu0 %v602
      %v924 = vpop.f32.mrf.mxu0
      %v925 = vadd.f32 %v677, %v924
      %926 = vmatmul.f32.gmra.mxu0 %v603
      %v927 = vpop.f32.mrf.mxu0
      %v928 = vadd.f32 %v677, %v927
      %929 = vmatmul.f32.gmra.mxu0 %v604
      %v930 = vpop.f32.mrf.mxu0
      %v931 = vadd.f32 %v677, %v930
      %932 = vmatmul.f32.gmra.mxu0 %v605
      %v933 = vpop.f32.mrf.mxu0
      %v934 = vadd.f32 %v677, %v933
      %935 = vmatmul.f32.gmra.mxu0 %v606
      %v936 = vpop.f32.mrf.mxu0
      %v937 = vadd.f32 %v677, %v936
      %938 = vmatmul.f32.gmra.mxu0 %v607
      %v939 = vpop.f32.mrf.mxu0
      %v940 = vadd.f32 %v677, %v939
      %941 = vdwg.mxu0
      %v942 = vmul.f32 %v700, 0.2
      %v943 = vmul.f32 %v765, 0.2
      %v944 = vmul.f32 %v830, 0.2
      %v945 = vmul.f32 %v895, 0.2
      %v946 = vmul.f32 %v703, 0.2
      %v947 = vmul.f32 %v768, 0.2
      %v948 = vmul.f32 %v833, 0.2
      %v949 = vmul.f32 %v898, 0.2
      %v950 = vmul.f32 %v706, 0.2
      %v951 = vmul.f32 %v771, 0.2
      %v952 = vmul.f32 %v836, 0.2
      %v953 = vmul.f32 %v901, 0.2
      %v954 = vmul.f32 %v709, 0.2
      %v955 = vmul.f32 %v774, 0.2
      %v956 = vmul.f32 %v839, 0.2
      %v957 = vmul.f32 %v904, 0.2
      %v958 = vmul.f32 %v712, 0.2
      %v959 = vmul.f32 %v777, 0.2
      %v960 = vmul.f32 %v842, 0.2
      %v961 = vmul.f32 %v907, 0.2
      %v962 = vmul.f32 %v715, 0.2
      %v963 = vmul.f32 %v780, 0.2
      %v964 = vmul.f32 %v845, 0.2
      %v965 = vmul.f32 %v910, 0.2
      %v966 = vmul.f32 %v718, 0.2
      %v967 = vmul.f32 %v783, 0.2
      %v968 = vmul.f32 %v848, 0.2
      %v969 = vmul.f32 %v913, 0.2
      %v970 = vmul.f32 %v721, 0.2
      %v971 = vmul.f32 %v786, 0.2
      %v972 = vmul.f32 %v851, 0.2
      %v973 = vmul.f32 %v916, 0.2
      %v974 = vmul.f32 %v724, 0.2
      %v975 = vmul.f32 %v789, 0.2
      %v976 = vmul.f32 %v854, 0.2
      %v977 = vmul.f32 %v919, 0.2
      %v978 = vmul.f32 %v727, 0.2
      %v979 = vmul.f32 %v792, 0.2
      %v980 = vmul.f32 %v857, 0.2
      %v981 = vmul.f32 %v922, 0.2
      %v982 = vmul.f32 %v730, 0.2
      %v983 = vmul.f32 %v795, 0.2
      %v984 = vmul.f32 %v860, 0.2
      %v985 = vmul.f32 %v925, 0.2
      %v986 = vmul.f32 %v733, 0.2
      %v987 = vmul.f32 %v798, 0.2
      %v988 = vmul.f32 %v863, 0.2
      %v989 = vmul.f32 %v928, 0.2
      %v990 = vmul.f32 %v736, 0.2
      %v991 = vmul.f32 %v801, 0.2
      %v992 = vmul.f32 %v866, 0.2
      %v993 = vmul.f32 %v931, 0.2
      %v994 = vmul.f32 %v739, 0.2
      %v995 = vmul.f32 %v804, 0.2
      %v996 = vmul.f32 %v869, 0.2
      %v997 = vmul.f32 %v934, 0.2
      %v998 = vmul.f32 %v742, 0.2
      %v999 = vmul.f32 %v807, 0.2
      %v1000 = vmul.f32 %v872, 0.2
      %v1001 = vmul.f32 %v937, 0.2
      %v1002 = vmul.f32 %v745, 0.2
      %v1003 = vmul.f32 %v810, 0.2
      %v1004 = vmul.f32 %v875, 0.2
      %v1005 = vmul.f32 %v940, 0.2
      %v1006 = vmax.f32 %v700, %v942
      %v1007 = vmax.f32 %v765, %v943
      %v1008 = vmax.f32 %v830, %v944
      %v1009 = vmax.f32 %v895, %v945
      %v1010 = vmax.f32 %v703, %v946
      %v1011 = vmax.f32 %v768, %v947
      %v1012 = vmax.f32 %v833, %v948
      %v1013 = vmax.f32 %v898, %v949
      %v1014 = vmax.f32 %v706, %v950
      %v1015 = vmax.f32 %v771, %v951
      %v1016 = vmax.f32 %v836, %v952
      %v1017 = vmax.f32 %v901, %v953
      %v1018 = vmax.f32 %v709, %v954
      %v1019 = vmax.f32 %v774, %v955
      %v1020 = vmax.f32 %v839, %v956
      %v1021 = vmax.f32 %v904, %v957
      %v1022 = vmax.f32 %v712, %v958
      %v1023 = vmax.f32 %v777, %v959
      %v1024 = vmax.f32 %v842, %v960
      %v1025 = vmax.f32 %v907, %v961
      %v1026 = vmax.f32 %v715, %v962
      %v1027 = vmax.f32 %v780, %v963
      %v1028 = vmax.f32 %v845, %v964
      %v1029 = vmax.f32 %v910, %v965
      %v1030 = vmax.f32 %v718, %v966
      %v1031 = vmax.f32 %v783, %v967
      %v1032 = vmax.f32 %v848, %v968
      %v1033 = vmax.f32 %v913, %v969
      %v1034 = vmax.f32 %v721, %v970
      %v1035 = vmax.f32 %v786, %v971
      %v1036 = vmax.f32 %v851, %v972
      %v1037 = vmax.f32 %v916, %v973
      %v1038 = vmax.f32 %v724, %v974
      %v1039 = vmax.f32 %v789, %v975
      %v1040 = vmax.f32 %v854, %v976
      %v1041 = vmax.f32 %v919, %v977
      %v1042 = vmax.f32 %v727, %v978
      %v1043 = vmax.f32 %v792, %v979
      %v1044 = vmax.f32 %v857, %v980
      %v1045 = vmax.f32 %v922, %v981
      %v1046 = vmax.f32 %v730, %v982
      %v1047 = vmax.f32 %v795, %v983
      %v1048 = vmax.f32 %v860, %v984
      %v1049 = vmax.f32 %v925, %v985
      %v1050 = vmax.f32 %v733, %v986
      %v1051 = vmax.f32 %v798, %v987
      %v1052 = vmax.f32 %v863, %v988
      %v1053 = vmax.f32 %v928, %v989
      %v1054 = vmax.f32 %v736, %v990
      %v1055 = vmax.f32 %v801, %v991
      %v1056 = vmax.f32 %v866, %v992
      %v1057 = vmax.f32 %v931, %v993
      %v1058 = vmax.f32 %v739, %v994
      %v1059 = vmax.f32 %v804, %v995
      %v1060 = vmax.f32 %v869, %v996
      %v1061 = vmax.f32 %v934, %v997
      %v1062 = vmax.f32 %v742, %v998
      %v1063 = vmax.f32 %v807, %v999
      %v1064 = vmax.f32 %v872, %v1000
      %v1065 = vmax.f32 %v937, %v1001
      %v1066 = vmax.f32 %v745, %v1002
      %v1067 = vmax.f32 %v810, %v1003
      %v1068 = vmax.f32 %v875, %v1004
      %v1069 = vmax.f32 %v940, %v1005
      %1070 = vxpose.xlu0.b32.start [1/16] %v1006, 128
      %1071 = vxpose.xlu0.b32.cont [2/16] %v1010, 128
      %1072 = vxpose.xlu0.b32.cont [3/16] %v1014, 128
      %1073 = vxpose.xlu0.b32.cont [4/16] %v1018, 128
      %1074 = vxpose.xlu0.b32.cont [5/16] %v1022, 128
      %1075 = vxpose.xlu0.b32.cont [6/16] %v1026, 128
      %1076 = vxpose.xlu0.b32.cont [7/16] %v1030, 128
      %1077 = vxpose.xlu0.b32.cont [8/16] %v1034, 128
      %1078 = vxpose.xlu0.b32.cont [9/16] %v1038, 128
      %1079 = vxpose.xlu0.b32.cont [10/16] %v1042, 128
      %1080 = vxpose.xlu0.b32.cont [11/16] %v1046, 128
      %1081 = vxpose.xlu0.b32.cont [12/16] %v1050, 128
      %1082 = vxpose.xlu0.b32.cont [13/16] %v1054, 128
      %1083 = vxpose.xlu0.b32.cont [14/16] %v1058, 128
      %1084 = vxpose.xlu0.b32.cont [15/16] %v1062, 128
      %1085 = vxpose.xlu0.b32.end [16/16] %v1066, 128
      %v1086 = vpop.trf.xlu0
      %v1087 = vpop.trf.xlu0
      %v1088 = vpop.trf.xlu0
      %v1089 = vpop.trf.xlu0
      %v1090 = vpop.trf.xlu0
      %v1091 = vpop.trf.xlu0
      %v1092 = vpop.trf.xlu0
      %v1093 = vpop.trf.xlu0
      %v1094 = vpop.trf.xlu0
      %v1095 = vpop.trf.xlu0
      %v1096 = vpop.trf.xlu0
      %v1097 = vpop.trf.xlu0
      %v1098 = vpop.trf.xlu0
      %v1099 = vpop.trf.xlu0
      %v1100 = vpop.trf.xlu0
      %v1101 = vpop.trf.xlu0
      %1102 = vxpose.xlu0.b32.start [1/16] %v1007, 128
      %1103 = vxpose.xlu0.b32.cont [2/16] %v1011, 128
      %1104 = vxpose.xlu0.b32.cont [3/16] %v1015, 128
      %1105 = vxpose.xlu0.b32.cont [4/16] %v1019, 128
      %1106 = vxpose.xlu0.b32.cont [5/16] %v1023, 128
      %1107 = vxpose.xlu0.b32.cont [6/16] %v1027, 128
      %1108 = vxpose.xlu0.b32.cont [7/16] %v1031, 128
      %1109 = vxpose.xlu0.b32.cont [8/16] %v1035, 128
      %1110 = vxpose.xlu0.b32.cont [9/16] %v1039, 128
      %1111 = vxpose.xlu0.b32.cont [10/16] %v1043, 128
      %1112 = vxpose.xlu0.b32.cont [11/16] %v1047, 128
      %1113 = vxpose.xlu0.b32.cont [12/16] %v1051, 128
      %1114 = vxpose.xlu0.b32.cont [13/16] %v1055, 128
      %1115 = vxpose.xlu0.b32.cont [14/16] %v1059, 128
      %1116 = vxpose.xlu0.b32.cont [15/16] %v1063, 128
      %1117 = vxpose.xlu0.b32.end [16/16] %v1067, 128
      %v1118 = vpop.trf.xlu0
      %v1119 = vpop.trf.xlu0
      %v1120 = vpop.trf.xlu0
      %v1121 = vpop.trf.xlu0
      %v1122 = vpop.trf.xlu0
      %v1123 = vpop.trf.xlu0
      %v1124 = vpop.trf.xlu0
      %v1125 = vpop.trf.xlu0
      %v1126 = vpop.trf.xlu0
      %v1127 = vpop.trf.xlu0
      %v1128 = vpop.trf.xlu0
      %v1129 = vpop.trf.xlu0
      %v1130 = vpop.trf.xlu0
      %v1131 = vpop.trf.xlu0
      %v1132 = vpop.trf.xlu0
      %v1133 = vpop.trf.xlu0
      %1134 = vxpose.xlu0.b32.start [1/16] %v1008, 128
      %1135 = vxpose.xlu0.b32.cont [2/16] %v1012, 128
      %1136 = vxpose.xlu0.b32.cont [3/16] %v1016, 128
      %1137 = vxpose.xlu0.b32.cont [4/16] %v1020, 128
      %1138 = vxpose.xlu0.b32.cont [5/16] %v1024, 128
      %1139 = vxpose.xlu0.b32.cont [6/16] %v1028, 128
      %1140 = vxpose.xlu0.b32.cont [7/16] %v1032, 128
      %1141 = vxpose.xlu0.b32.cont [8/16] %v1036, 128
      %1142 = vxpose.xlu0.b32.cont [9/16] %v1040, 128
      %1143 = vxpose.xlu0.b32.cont [10/16] %v1044, 128
      %1144 = vxpose.xlu0.b32.cont [11/16] %v1048, 128
      %1145 = vxpose.xlu0.b32.cont [12/16] %v1052, 128
      %1146 = vxpose.xlu0.b32.cont [13/16] %v1056, 128
      %1147 = vxpose.xlu0.b32.cont [14/16] %v1060, 128
      %1148 = vxpose.xlu0.b32.cont [15/16] %v1064, 128
      %1149 = vxpose.xlu0.b32.end [16/16] %v1068, 128
      %v1150 = vpop.trf.xlu0
      %v1151 = vpop.trf.xlu0
      %v1152 = vpop.trf.xlu0
      %v1153 = vpop.trf.xlu0
      %v1154 = vpop.trf.xlu0
      %v1155 = vpop.trf.xlu0
      %v1156 = vpop.trf.xlu0
      %v1157 = vpop.trf.xlu0
      %v1158 = vpop.trf.xlu0
      %v1159 = vpop.trf.xlu0
      %v1160 = vpop.trf.xlu0
      %v1161 = vpop.trf.xlu0
      %v1162 = vpop.trf.xlu0
      %v1163 = vpop.trf.xlu0
      %v1164 = vpop.trf.xlu0
      %v1165 = vpop.trf.xlu0
      %1166 = vxpose.xlu0.b32.start [1/16] %v1009, 128
      %1167 = vxpose.xlu0.b32.cont [2/16] %v1013, 128
      %1168 = vxpose.xlu0.b32.cont [3/16] %v1017, 128
      %1169 = vxpose.xlu0.b32.cont [4/16] %v1021, 128
      %1170 = vxpose.xlu0.b32.cont [5/16] %v1025, 128
      %1171 = vxpose.xlu0.b32.cont [6/16] %v1029, 128
      %1172 = vxpose.xlu0.b32.cont [7/16] %v1033, 128
      %1173 = vxpose.xlu0.b32.cont [8/16] %v1037, 128
      %1174 = vxpose.xlu0.b32.cont [9/16] %v1041, 128
      %1175 = vxpose.xlu0.b32.cont [10/16] %v1045, 128
      %1176 = vxpose.xlu0.b32.cont [11/16] %v1049, 128
      %1177 = vxpose.xlu0.b32.cont [12/16] %v1053, 128
      %1178 = vxpose.xlu0.b32.cont [13/16] %v1057, 128
      %1179 = vxpose.xlu0.b32.cont [14/16] %v1061, 128
      %1180 = vxpose.xlu0.b32.cont [15/16] %v1065, 128
      %1181 = vxpose.xlu0.b32.end [16/16] %v1069, 128
      %v1182 = vpop.trf.xlu0
      %v1183 = vpop.trf.xlu0
      %v1184 = vpop.trf.xlu0
      %v1185 = vpop.trf.xlu0
      %v1186 = vpop.trf.xlu0
      %v1187 = vpop.trf.xlu0
      %v1188 = vpop.trf.xlu0
      %v1189 = vpop.trf.xlu0
      %v1190 = vpop.trf.xlu0
      %v1191 = vpop.trf.xlu0
      %v1192 = vpop.trf.xlu0
      %v1193 = vpop.trf.xlu0
      %v1194 = vpop.trf.xlu0
      %v1195 = vpop.trf.xlu0
      %v1196 = vpop.trf.xlu0
      %v1197 = vpop.trf.xlu0
      %1198 = vst [vmem:[%s278] sm:$0xff] %v1086
      %1199 = vst [vmem:[%s278 + $0x8] sm:$0xff] %v1087
      %1200 = vst [vmem:[%s278 + $0x10] sm:$0xff] %v1088
      %1201 = vst [vmem:[%s278 + $0x18] sm:$0xff] %v1089
      %1202 = vst [vmem:[%s278 + $0x20] sm:$0xff] %v1090
      %1203 = vst [vmem:[%s278 + $0x28] sm:$0xff] %v1091
      %1204 = vst [vmem:[%s278 + $0x30] sm:$0xff] %v1092
      %1205 = vst [vmem:[%s278 + $0x38] sm:$0xff] %v1093
      %1206 = vst [vmem:[%s278 + $0x40] sm:$0xff] %v1094
      %1207 = vst [vmem:[%s278 + $0x48] sm:$0xff] %v1095
      %1208 = vst [vmem:[%s278 + $0x50] sm:$0xff] %v1096
      %1209 = vst [vmem:[%s278 + $0x58] sm:$0xff] %v1097
      %1210 = vst [vmem:[%s278 + $0x60] sm:$0xff] %v1098
      %1211 = vst [vmem:[%s278 + $0x68] sm:$0xff] %v1099
      %1212 = vst [vmem:[%s278 + $0x70] sm:$0xff] %v1100
      %1213 = vst [vmem:[%s278 + $0x78] sm:$0xff] %v1101
      %1214 = vst [vmem:[%s278 + $0x80] sm:$0xff] %v1118
      %1215 = vst [vmem:[%s278 + $0x88] sm:$0xff] %v1119
      %1216 = vst [vmem:[%s278 + $0x90] sm:$0xff] %v1120
      %1217 = vst [vmem:[%s278 + $0x98] sm:$0xff] %v1121
      %1218 = vst [vmem:[%s278 + $0xa0] sm:$0xff] %v1122
      %1219 = vst [vmem:[%s278 + $0xa8] sm:$0xff] %v1123
      %1220 = vst [vmem:[%s278 + $0xb0] sm:$0xff] %v1124
      %1221 = vst [vmem:[%s278 + $0xb8] sm:$0xff] %v1125
      %1222 = vst [vmem:[%s278 + $0xc0] sm:$0xff] %v1126
      %1223 = vst [vmem:[%s278 + $0xc8] sm:$0xff] %v1127
      %1224 = vst [vmem:[%s278 + $0xd0] sm:$0xff] %v1128
      %1225 = vst [vmem:[%s278 + $0xd8] sm:$0xff] %v1129
      %1226 = vst [vmem:[%s278 + $0xe0] sm:$0xff] %v1130
      %1227 = vst [vmem:[%s278 + $0xe8] sm:$0xff] %v1131
      %1228 = vst [vmem:[%s278 + $0xf0] sm:$0xff] %v1132
      %1229 = vst [vmem:[%s278 + $0xf8] sm:$0xff] %v1133
      %1230 = vst [vmem:[%s278 + $0x100] sm:$0xff] %v1150
      %1231 = vst [vmem:[%s278 + $0x108] sm:$0xff] %v1151
      %1232 = vst [vmem:[%s278 + $0x110] sm:$0xff] %v1152
      %1233 = vst [vmem:[%s278 + $0x118] sm:$0xff] %v1153
      %1234 = vst [vmem:[%s278 + $0x120] sm:$0xff] %v1154
      %1235 = vst [vmem:[%s278 + $0x128] sm:$0xff] %v1155
      %1236 = vst [vmem:[%s278 + $0x130] sm:$0xff] %v1156
      %1237 = vst [vmem:[%s278 + $0x138] sm:$0xff] %v1157
      %1238 = vst [vmem:[%s278 + $0x140] sm:$0xff] %v1158
      %1239 = vst [vmem:[%s278 + $0x148] sm:$0xff] %v1159
      %1240 = vst [vmem:[%s278 + $0x150] sm:$0xff] %v1160
      %1241 = vst [vmem:[%s278 + $0x158] sm:$0xff] %v1161
      %1242 = vst [vmem:[%s278 + $0x160] sm:$0xff] %v1162
      %1243 = vst [vmem:[%s278 + $0x168] sm:$0xff] %v1163
      %1244 = vst [vmem:[%s278 + $0x170] sm:$0xff] %v1164
      %1245 = vst [vmem:[%s278 + $0x178] sm:$0xff] %v1165
      %1246 = vst [vmem:[%s278 + $0x180] sm:$0xff] %v1182
      %1247 = vst [vmem:[%s278 + $0x188] sm:$0xff] %v1183
      %1248 = vst [vmem:[%s278 + $0x190] sm:$0xff] %v1184
      %1249 = vst [vmem:[%s278 + $0x198] sm:$0xff] %v1185
      %1250 = vst [vmem:[%s278 + $0x1a0] sm:$0xff] %v1186
      %1251 = vst [vmem:[%s278 + $0x1a8] sm:$0xff] %v1187
      %1252 = vst [vmem:[%s278 + $0x1b0] sm:$0xff] %v1188
      %1253 = vst [vmem:[%s278 + $0x1b8] sm:$0xff] %v1189
      %1254 = vst [vmem:[%s278 + $0x1c0] sm:$0xff] %v1190
      %1255 = vst [vmem:[%s278 + $0x1c8] sm:$0xff] %v1191
      %1256 = vst [vmem:[%s278 + $0x1d0] sm:$0xff] %v1192
      %1257 = vst [vmem:[%s278 + $0x1d8] sm:$0xff] %v1193
      %1258 = vst [vmem:[%s278 + $0x1e0] sm:$0xff] %v1194
      %1259 = vst [vmem:[%s278 + $0x1e8] sm:$0xff] %v1195
      %1260 = vst [vmem:[%s278 + $0x1f0] sm:$0xff] %v1196
      %1261 = vst [vmem:[%s278 + $0x1f8] sm:$0xff] %v1197
      %p1262 = scmp.lt.s32.totalorder %s18, 1
      %s1263 = scalar_select %p1262, %s18, 1
      %s1264 = smul.addr %s1263, 64
      %s1265 = smul.addr %s1264, 8
      %s1266 = scalar_lea.vmem %s7, %s1265
      // Predicated region
      $region49: #{discriminator_forward.2} parent=47 // pred_check
        %p1267 = pneg %p188
      $region50: #{discriminator_forward.2} parent=47 // pred_check_branch
        %1269 = sbr.rel (%p1267) target = $region52
      $region51: #{discriminator_forward.2} parent=47 // pred_region
        _
      $region52: #{discriminator_forward.2} parent=47 // pred_fallthru
        _
    $region48: #{discriminator_forward.2} parent=5 // pred_fallthru
      _
    %p1270 = scmp.le.s32.totalorder 2, %s13
    // Predicated region
    $region53: #{discriminator_forward.2} parent=5 // pred_check
      %p1271 = pneg %p1270
    $region54: #{discriminator_forward.2} parent=5 // pred_check_branch
      %1273 = sbr.rel (%p1271) target = $region56
    $region55: #{discriminator_forward.2} parent=5 // pred_region
      %s1274 = ssub.s32 %s13, 2
      // Predicated region
      $region57: #{discriminator_forward.2} parent=55 // pred_check
        %p1275 = pneg %p194
      $region58: #{discriminator_forward.2} parent=55 // pred_check_branch
        %1277 = sbr.rel (%p1275) target = $region60
      $region59: #{discriminator_forward.2} parent=55 // pred_region
        %p1278 = scmp.lt.s32.totalorder %s19, 1
        %s1279 = scalar_select %p1278, %s19, 1
        %s1280 = smul.addr %s1279, 64
        %s1281 = smul.addr %s1280, 8
        %s1282 = scalar_lea.vmem %s7, %s1281
      $region60: #{discriminator_forward.2} parent=55 // pred_fallthru
        _
    $region56: #{discriminator_forward.2} parent=5 // pred_fallthru
      _
  $region6: #{discriminator_forward.2} parent=0 // loop_footer
    %s17 = sadd.s32 1, %s13
  $region7: #{discriminator_forward.2} parent=0 // loop_footer_branch
    %12 = sbr.rel target = $region3
  $region8: #{discriminator_forward.2} parent=0 // loop_exit
    _

// kernel: discriminator_forward.3
$region0: #{discriminator_forward.3}
  #allocation0 [shape = 'u32[]', space=smem, size = 0x4, offset = 0x4, fixed_abs, tag = 'smem constant byte address 0x4 - core index']
  #allocation1 [shape = 'u32[72,128]{1,0:T(1,128)}', space=vmem, size = 0x9000, scoped, tag = 'internal scratch']
  #allocation2 [shape = 'f32[1,1]{1,0:T(1,128)S(1)}', space=vmem, size = 0x200, scoped, tag = 'scoped memory for discriminator_forward.3']
  %s0 = inlined_call_operand.vmem [shape: f32[2,128,512], index: 0, kind: input, shape index: {}]
  %s1 = inlined_call_operand.vmem [shape: f32[512,128], index: 1, kind: input, shape index: {}]
  %s2 = inlined_call_operand.vmem [shape: f32[1,128], index: 2, kind: input, shape index: {}]
  %s3 = inlined_call_operand.vmem [shape: f32[128,64], index: 3, kind: input, shape index: {}]
  %s4 = inlined_call_operand.vmem [shape: f32[1,64], index: 4, kind: input, shape index: {}]
  %s5 = inlined_call_operand.vmem [shape: f32[1,64], index: 5, kind: input, shape index: {}]
  %s6 = inlined_call_operand.<no memory space> [shape: f32[1,1], index: 6, kind: input, shape index: {}]
  %s7 = inlined_call_operand.vmem [shape: f32[2,1,1], index: 7, kind: output, shape index: {}]
  %s8 = sld [smem:[#allocation0]]
  $region61: #{discriminator_forward.3} parent=0
    _
  %s10 = ssub.s32 1, %s8
  %s11 = scalar_select 0, %s10, %s8
  %v12 = vstv %s6
  %13 = vst [vmem:[#allocation2] sm:$0x1] %v12
  loop: start=0, step=1, limit=4
  $region2: #{discriminator_forward.3} parent=0 // loop_pre_header
    _
  $region3: #{discriminator_forward.3} parent=0 // loop_header
    %s15 = sphi 0, %s19
    %p16 = scmp.ge.s32.totalorder %s15, 4
    %s25 = sphi 0, %s27
    %s28 = sphi 0, %s25
    %s29 = sphi 0, %s28
    %s45 = sphi 0, %s29
    %s49 = sphi 0, %s49
    %s51 = sphi 0, %s49
    %s52 = sphi 0, %s51
    %s66 = sphi 0, %s52
    %s70 = sphi 0, %s70
    %s72 = sphi 0, %s70
    %s73 = sphi 0, %s72
    %s87 = sphi 0, %s73
    %s91 = sphi 0, %s91
    %s93 = sphi 0, %s91
    %s94 = sphi 0, %s93
    %s108 = sphi 0, %s94
    %s112 = sphi 0, %s112
    %s114 = sphi 0, %s112
    %s115 = sphi 0, %s114
    %s129 = sphi 0, %s115
    %s133 = sphi 0, %s133
    %s135 = sphi 0, %s133
    %s136 = sphi 0, %s135
    %s150 = sphi 0, %s136
    %s154 = sphi 0, %s154
    %s156 = sphi 0, %s154
    %s157 = sphi 0, %s156
    %s171 = sphi 0, %s157
    %s177 = sphi 0, %s179
    %s180 = sphi 0, %s177
    %s181 = sphi 0, %s180
    %s197 = sphi 0, %s181
  $region4: #{discriminator_forward.3} parent=0 // loop_header_branch
    %18 = sbr.rel (%p16) target = $region8
  $region5: #{discriminator_forward.3} parent=0 // loop_body
    %s20 = ssub.s32 %s15, 1
    %s21 = ssub.s32 %s15, 2
    %s22 = sadd.s32 %s15, 1
    %s23 = ssub.s32 %s15, %s22
    %p24 = scmp.eq.s32.totalorder %s23, 0
    %s26 = sadd.s32 %s25, 1
    %s27 = scalar_select %p24, %s25, %s26
    %p30 = pneg %p24
    %p31 = scmp.eq.s32.totalorder %s15, 1
    %p32 = por %p30, %p31
    %p33 = scmp.ne.s32.totalorder %s25, %s28
    %p34 = scmp.eq.s32.totalorder %s15, 0
    %p35 = por %p33, %p34
    %p36 = scmp.ne.s32.totalorder %s25, %s28
    %p37 = scmp.eq.s32.totalorder %s20, 1
    %p38 = por %p36, %p37
    %p39 = scmp.ne.s32.totalorder %s28, %s29
    %p40 = scmp.eq.s32.totalorder %s20, 0
    %p41 = por %p39, %p40
    %p42 = scmp.ne.s32.totalorder %s28, %s29
    %p43 = scmp.eq.s32.totalorder %s21, 1
    %p44 = por %p42, %p43
    %p46 = scmp.ne.s32.totalorder %s29, %s45
    %p47 = scmp.eq.s32.totalorder %s21, 0
    %p48 = por %p46, %p47
    %s50 = sadd.s32 %s49, 1
    %p53 = scmp.eq.s32.totalorder %s15, 1
    %p54 = scmp.ne.s32.totalorder %s49, %s51
    %p55 = scmp.eq.s32.totalorder %s15, 0
    %p56 = por %p54, %p55
    %p57 = scmp.ne.s32.totalorder %s49, %s51
    %p58 = scmp.eq.s32.totalorder %s20, 1
    %p59 = por %p57, %p58
    %p60 = scmp.ne.s32.totalorder %s51, %s52
    %p61 = scmp.eq.s32.totalorder %s20, 0
    %p62 = por %p60, %p61
    %p63 = scmp.ne.s32.totalorder %s51, %s52
    %p64 = scmp.eq.s32.totalorder %s21, 1
    %p65 = por %p63, %p64
    %p67 = scmp.ne.s32.totalorder %s52, %s66
    %p68 = scmp.eq.s32.totalorder %s21, 0
    %p69 = por %p67, %p68
    %s71 = sadd.s32 %s70, 1
    %p74 = scmp.eq.s32.totalorder %s15, 1
    %p75 = scmp.ne.s32.totalorder %s70, %s72
    %p76 = scmp.eq.s32.totalorder %s15, 0
    %p77 = por %p75, %p76
    %p78 = scmp.ne.s32.totalorder %s70, %s72
    %p79 = scmp.eq.s32.totalorder %s20, 1
    %p80 = por %p78, %p79
    %p81 = scmp.ne.s32.totalorder %s72, %s73
    %p82 = scmp.eq.s32.totalorder %s20, 0
    %p83 = por %p81, %p82
    %p84 = scmp.ne.s32.totalorder %s72, %s73
    %p85 = scmp.eq.s32.totalorder %s21, 1
    %p86 = por %p84, %p85
    %p88 = scmp.ne.s32.totalorder %s73, %s87
    %p89 = scmp.eq.s32.totalorder %s21, 0
    %p90 = por %p88, %p89
    %s92 = sadd.s32 %s91, 1
    %p95 = scmp.eq.s32.totalorder %s15, 1
    %p96 = scmp.ne.s32.totalorder %s91, %s93
    %p97 = scmp.eq.s32.totalorder %s15, 0
    %p98 = por %p96, %p97
    %p99 = scmp.ne.s32.totalorder %s91, %s93
    %p100 = scmp.eq.s32.totalorder %s20, 1
    %p101 = por %p99, %p100
    %p102 = scmp.ne.s32.totalorder %s93, %s94
    %p103 = scmp.eq.s32.totalorder %s20, 0
    %p104 = por %p102, %p103
    %p105 = scmp.ne.s32.totalorder %s93, %s94
    %p106 = scmp.eq.s32.totalorder %s21, 1
    %p107 = por %p105, %p106
    %p109 = scmp.ne.s32.totalorder %s94, %s108
    %p110 = scmp.eq.s32.totalorder %s21, 0
    %p111 = por %p109, %p110
    %s113 = sadd.s32 %s112, 1
    %p116 = scmp.eq.s32.totalorder %s15, 1
    %p117 = scmp.ne.s32.totalorder %s112, %s114
    %p118 = scmp.eq.s32.totalorder %s15, 0
    %p119 = por %p117, %p118
    %p120 = scmp.ne.s32.totalorder %s112, %s114
    %p121 = scmp.eq.s32.totalorder %s20, 1
    %p122 = por %p120, %p121
    %p123 = scmp.ne.s32.totalorder %s114, %s115
    %p124 = scmp.eq.s32.totalorder %s20, 0
    %p125 = por %p123, %p124
    %p126 = scmp.ne.s32.totalorder %s114, %s115
    %p127 = scmp.eq.s32.totalorder %s21, 1
    %p128 = por %p126, %p127
    %p130 = scmp.ne.s32.totalorder %s115, %s129
    %p131 = scmp.eq.s32.totalorder %s21, 0
    %p132 = por %p130, %p131
    %s134 = sadd.s32 %s133, 1
    %p137 = scmp.eq.s32.totalorder %s15, 1
    %p138 = scmp.ne.s32.totalorder %s133, %s135
    %p139 = scmp.eq.s32.totalorder %s15, 0
    %p140 = por %p138, %p139
    %p141 = scmp.ne.s32.totalorder %s133, %s135
    %p142 = scmp.eq.s32.totalorder %s20, 1
    %p143 = por %p141, %p142
    %p144 = scmp.ne.s32.totalorder %s135, %s136
    %p145 = scmp.eq.s32.totalorder %s20, 0
    %p146 = por %p144, %p145
    %p147 = scmp.ne.s32.totalorder %s135, %s136
    %p148 = scmp.eq.s32.totalorder %s21, 1
    %p149 = por %p147, %p148
    %p151 = scmp.ne.s32.totalorder %s136, %s150
    %p152 = scmp.eq.s32.totalorder %s21, 0
    %p153 = por %p151, %p152
    %s155 = sadd.s32 %s154, 1
    %p158 = scmp.eq.s32.totalorder %s15, 1
    %p159 = scmp.ne.s32.totalorder %s154, %s156
    %p160 = scmp.eq.s32.totalorder %s15, 0
    %p161 = por %p159, %p160
    %p162 = scmp.ne.s32.totalorder %s154, %s156
    %p163 = scmp.eq.s32.totalorder %s20, 1
    %p164 = por %p162, %p163
    %p165 = scmp.ne.s32.totalorder %s156, %s157
    %p166 = scmp.eq.s32.totalorder %s20, 0
    %p167 = por %p165, %p166
    %p168 = scmp.ne.s32.totalorder %s156, %s157
    %p169 = scmp.eq.s32.totalorder %s21, 1
    %p170 = por %p168, %p169
    %p172 = scmp.ne.s32.totalorder %s157, %s171
    %p173 = scmp.eq.s32.totalorder %s21, 0
    %p174 = por %p172, %p173
    %s175 = ssub.s32 %s15, %s22
    %p176 = scmp.eq.s32.totalorder %s175, 0
    %s178 = sadd.s32 %s177, 1
    %s179 = scalar_select %p176, %s177, %s178
    %p182 = pneg %p176
    %p183 = scmp.eq.s32.totalorder %s15, 1
    %p184 = por %p182, %p183
    %p185 = scmp.ne.s32.totalorder %s177, %s180
    %p186 = scmp.eq.s32.totalorder %s15, 0
    %p187 = por %p185, %p186
    %p188 = scmp.ne.s32.totalorder %s177, %s180
    %p189 = scmp.eq.s32.totalorder %s20, 1
    %p190 = por %p188, %p189
    %p191 = scmp.ne.s32.totalorder %s180, %s181
    %p192 = scmp.eq.s32.totalorder %s20, 0
    %p193 = por %p191, %p192
    %p194 = scmp.ne.s32.totalorder %s180, %s181
    %p195 = scmp.eq.s32.totalorder %s21, 1
    %p196 = por %p194, %p195
    %p198 = scmp.ne.s32.totalorder %s181, %s197
    %p199 = scmp.eq.s32.totalorder %s21, 0
    %p200 = por %p198, %p199
    %p201 = scmp.le.s32.totalorder 1, %s15
    %p202 = scmp.lt.s32.totalorder %s15, 3
    %p203 = pnand %p201, %p202
    %p204 = pneg %p203
    // Predicated region
    $region9: #{discriminator_forward.3} parent=5 // pred_check
      _
    $region10: #{discriminator_forward.3} parent=5 // pred_check_branch
      %206 = sbr.rel (%p203) target = $region12
    $region11: #{discriminator_forward.3} parent=5 // pred_region
      %s207 = ssub.s32 %s15, 1
      // Predicated region
      $region13: #{discriminator_forward.3} parent=11 // pred_check
        %p208 = pneg %p62
      $region14: #{discriminator_forward.3} parent=11 // pred_check_branch
        %210 = sbr.rel (%p208) target = $region16
      $region15: #{discriminator_forward.3} parent=11 // pred_region
        _
      $region16: #{discriminator_forward.3} parent=11 // pred_fallthru
        _
      // Predicated region
      $region17: #{discriminator_forward.3} parent=11 // pred_check
        %p211 = pneg %p83
      $region18: #{discriminator_forward.3} parent=11 // pred_check_branch
        %213 = sbr.rel (%p211) target = $region20
      $region19: #{discriminator_forward.3} parent=11 // pred_region
        _
      $region20: #{discriminator_forward.3} parent=11 // pred_fallthru
        _
      // Predicated region
      $region21: #{discriminator_forward.3} parent=11 // pred_check
        %p214 = pneg %p104
      $region22: #{discriminator_forward.3} parent=11 // pred_check_branch
        %216 = sbr.rel (%p214) target = $region24
      $region23: #{discriminator_forward.3} parent=11 // pred_region
        _
      $region24: #{discriminator_forward.3} parent=11 // pred_fallthru
        _
      // Predicated region
      $region25: #{discriminator_forward.3} parent=11 // pred_check
        %p217 = pneg %p125
      $region26: #{discriminator_forward.3} parent=11 // pred_check_branch
        %219 = sbr.rel (%p217) target = $region28
      $region27: #{discriminator_forward.3} parent=11 // pred_region
        _
      $region28: #{discriminator_forward.3} parent=11 // pred_fallthru
        _
      // Predicated region
      $region29: #{discriminator_forward.3} parent=11 // pred_check
        %p220 = pneg %p146
      $region30: #{discriminator_forward.3} parent=11 // pred_check_branch
        %222 = sbr.rel (%p220) target = $region32
      $region31: #{discriminator_forward.3} parent=11 // pred_region
        _
      $region32: #{discriminator_forward.3} parent=11 // pred_fallthru
        _
      // Predicated region
      $region33: #{discriminator_forward.3} parent=11 // pred_check
        %p223 = pneg %p167
      $region34: #{discriminator_forward.3} parent=11 // pred_check_branch
        %225 = sbr.rel (%p223) target = $region36
      $region35: #{discriminator_forward.3} parent=11 // pred_region
        _
      $region36: #{discriminator_forward.3} parent=11 // pred_fallthru
        _
    $region12: #{discriminator_forward.3} parent=5 // pred_fallthru
      _
    %p226 = scmp.lt.s32.totalorder %s15, 2
    // Predicated region
    $region37: #{discriminator_forward.3} parent=5 // pred_check
      %p227 = pneg %p226
    $region38: #{discriminator_forward.3} parent=5 // pred_check_branch
      %229 = sbr.rel (%p227) target = $region40
    $region39: #{discriminator_forward.3} parent=5 // pred_region
      // Predicated region
      $region41: #{discriminator_forward.3} parent=39 // pred_check
        %p230 = pneg %p35
      $region42: #{discriminator_forward.3} parent=39 // pred_check_branch
        %232 = sbr.rel (%p230) target = $region44
      $region43: #{discriminator_forward.3} parent=39 // pred_region
        %p233 = scmp.lt.s32.totalorder %s15, 1
        %s234 = scalar_select %p233, %s15, 1
        %s235 = smul.addr %s234, 64
        %s236 = smul.addr %s235, 8
        %s237 = scalar_lea.vmem %s0, %s236
      $region44: #{discriminator_forward.3} parent=39 // pred_fallthru
        _
    $region40: #{discriminator_forward.3} parent=5 // pred_fallthru
      _
    %p238 = scmp.le.s32.totalorder 1, %s15
    %p239 = scmp.lt.s32.totalorder %s15, 3
    %p240 = pnand %p238, %p239
    %p241 = pneg %p240
    // Predicated region
    $region45: #{discriminator_forward.3} parent=5 // pred_check
      _
    $region46: #{discriminator_forward.3} parent=5 // pred_check_branch
      %243 = sbr.rel (%p240) target = $region48
    $region47: #{discriminator_forward.3} parent=5 // pred_region
      %s244 = ssub.s32 %s15, 1
      %p245 = scmp.lt.s32.totalorder %s20, 1
      %s246 = scalar_select %p245, %s20, 1
      %s247 = smul.addr %s246, 64
      %s248 = smul.addr %s247, 8
      %s249 = scalar_lea.vmem %s0, %s248
      %p250 = pneg %p41
      %p251 = pneg %p38
      %p252 = pneg %p62
      %p253 = pneg %p59
      %p254 = pneg %p83
      %p255 = pneg %p80
      %p256 = pneg %p104
      %p257 = pneg %p101
      %p258 = pneg %p125
      %p259 = pneg %p122
      %p260 = pneg %p146
      %p261 = pneg %p143
      %p262 = pneg %p167
      %p263 = pneg %p164
      %p264 = pneg %p193
      %p265 = pneg %p190
      %p266 = scmp.lt.s32.totalorder %s20, 1
      %s267 = scalar_select %p266, %s20, 1
      %s268 = scalar_lea.vmem %s7, %s267
      %p269 = scmp.lt.s32.totalorder %s20, 1
      %s270 = scalar_select %p269, %s20, 1
      %s271 = smul.addr %s270, 64
      %s272 = smul.addr %s271, 8
      %s273 = scalar_lea.vmem %s0, %s272
      %p274 = scmp.lt.s32.totalorder %s20, 1
      %s275 = scalar_select %p274, %s20, 1
      %s276 = scalar_lea.vmem %s7, %s275
      %v277 = vld [vmem:[%s273] sm:$0xff]
      %v278 = vld [vmem:[%s273 + $0x8] sm:$0xff]
      %v279 = vld [vmem:[%s273 + $0x10] sm:$0xff]
      %v280 = vld [vmem:[%s273 + $0x18] sm:$0xff]
      %v281 = vld [vmem:[%s273 + $0x20] sm:$0xff]
      %v282 = vld [vmem:[%s273 + $0x28] sm:$0xff]
      %v283 = vld [vmem:[%s273 + $0x30] sm:$0xff]
      %v284 = vld [vmem:[%s273 + $0x38] sm:$0xff]
      %v285 = vld [vmem:[%s273 + $0x40] sm:$0xff]
      %v286 = vld [vmem:[%s273 + $0x48] sm:$0xff]
      %v287 = vld [vmem:[%s273 + $0x50] sm:$0xff]
      %v288 = vld [vmem:[%s273 + $0x58] sm:$0xff]
      %v289 = vld [vmem:[%s273 + $0x60] sm:$0xff]
      %v290 = vld [vmem:[%s273 + $0x68] sm:$0xff]
      %v291 = vld [vmem:[%s273 + $0x70] sm:$0xff]
      %v292 = vld [vmem:[%s273 + $0x78] sm:$0xff]
      %v293 = vld [vmem:[%s273 + $0x80] sm:$0xff]
      %v294 = vld [vmem:[%s273 + $0x88] sm:$0xff]
      %v295 = vld [vmem:[%s273 + $0x90] sm:$0xff]
      %v296 = vld [vmem:[%s273 + $0x98] sm:$0xff]
      %v297 = vld [vmem:[%s273 + $0xa0] sm:$0xff]
      %v298 = vld [vmem:[%s273 + $0xa8] sm:$0xff]
      %v299 = vld [vmem:[%s273 + $0xb0] sm:$0xff]
      %v300 = vld [vmem:[%s273 + $0xb8] sm:$0xff]
      %v301 = vld [vmem:[%s273 + $0xc0] sm:$0xff]
      %v302 = vld [vmem:[%s273 + $0xc8] sm:$0xff]
      %v303 = vld [vmem:[%s273 + $0xd0] sm:$0xff]
      %v304 = vld [vmem:[%s273 + $0xd8] sm:$0xff]
      %v305 = vld [vmem:[%s273 + $0xe0] sm:$0xff]
      %v306 = vld [vmem:[%s273 + $0xe8] sm:$0xff]
      %v307 = vld [vmem:[%s273 + $0xf0] sm:$0xff]
      %v308 = vld [vmem:[%s273 + $0xf8] sm:$0xff]
      %v309 = vld [vmem:[%s273 + $0x100] sm:$0xff]
      %v310 = vld [vmem:[%s273 + $0x108] sm:$0xff]
      %v311 = vld [vmem:[%s273 + $0x110] sm:$0xff]
      %v312 = vld [vmem:[%s273 + $0x118] sm:$0xff]
      %v313 = vld [vmem:[%s273 + $0x120] sm:$0xff]
      %v314 = vld [vmem:[%s273 + $0x128] sm:$0xff]
      %v315 = vld [vmem:[%s273 + $0x130] sm:$0xff]
      %v316 = vld [vmem:[%s273 + $0x138] sm:$0xff]
      %v317 = vld [vmem:[%s273 + $0x140] sm:$0xff]
      %v318 = vld [vmem:[%s273 + $0x148] sm:$0xff]
      %v319 = vld [vmem:[%s273 + $0x150] sm:$0xff]
      %v320 = vld [vmem:[%s273 + $0x158] sm:$0xff]
      %v321 = vld [vmem:[%s273 + $0x160] sm:$0xff]
      %v322 = vld [vmem:[%s273 + $0x168] sm:$0xff]
      %v323 = vld [vmem:[%s273 + $0x170] sm:$0xff]
      %v324 = vld [vmem:[%s273 + $0x178] sm:$0xff]
      %v325 = vld [vmem:[%s273 + $0x180] sm:$0xff]
      %v326 = vld [vmem:[%s273 + $0x188] sm:$0xff]
      %v327 = vld [vmem:[%s273 + $0x190] sm:$0xff]
      %v328 = vld [vmem:[%s273 + $0x198] sm:$0xff]
      %v329 = vld [vmem:[%s273 + $0x1a0] sm:$0xff]
      %v330 = vld [vmem:[%s273 + $0x1a8] sm:$0xff]
      %v331 = vld [vmem:[%s273 + $0x1b0] sm:$0xff]
      %v332 = vld [vmem:[%s273 + $0x1b8] sm:$0xff]
      %v333 = vld [vmem:[%s273 + $0x1c0] sm:$0xff]
      %v334 = vld [vmem:[%s273 + $0x1c8] sm:$0xff]
      %v335 = vld [vmem:[%s273 + $0x1d0] sm:$0xff]
      %v336 = vld [vmem:[%s273 + $0x1d8] sm:$0xff]
      %v337 = vld [vmem:[%s273 + $0x1e0] sm:$0xff]
      %v338 = vld [vmem:[%s273 + $0x1e8] sm:$0xff]
      %v339 = vld [vmem:[%s273 + $0x1f0] sm:$0xff]
      %v340 = vld [vmem:[%s273 + $0x1f8] sm:$0xff]
      %v341 = vld [vmem:[%s1] sm:$0xff]
      %v342 = vld [vmem:[%s1 + $0x8] sm:$0xff]
      %v343 = vld [vmem:[%s1 + $0x10] sm:$0xff]
      %v344 = vld [vmem:[%s1 + $0x18] sm:$0xff]
      %v345 = vld [vmem:[%s1 + $0x20] sm:$0xff]
      %v346 = vld [vmem:[%s1 + $0x28] sm:$0xff]
      %v347 = vld [vmem:[%s1 + $0x30] sm:$0xff]
      %v348 = vld [vmem:[%s1 + $0x38] sm:$0xff]
      %v349 = vld [vmem:[%s1 + $0x40] sm:$0xff]
      %v350 = vld [vmem:[%s1 + $0x48] sm:$0xff]
      %v351 = vld [vmem:[%s1 + $0x50] sm:$0xff]
      %v352 = vld [vmem:[%s1 + $0x58] sm:$0xff]
      %v353 = vld [vmem:[%s1 + $0x60] sm:$0xff]
      %v354 = vld [vmem:[%s1 + $0x68] sm:$0xff]
      %v355 = vld [vmem:[%s1 + $0x70] sm:$0xff]
      %v356 = vld [vmem:[%s1 + $0x78] sm:$0xff]
      %v357 = vld [vmem:[%s1 + $0x80] sm:$0xff]
      %v358 = vld [vmem:[%s1 + $0x88] sm:$0xff]
      %v359 = vld [vmem:[%s1 + $0x90] sm:$0xff]
      %v360 = vld [vmem:[%s1 + $0x98] sm:$0xff]
      %v361 = vld [vmem:[%s1 + $0xa0] sm:$0xff]
      %v362 = vld [vmem:[%s1 + $0xa8] sm:$0xff]
      %v363 = vld [vmem:[%s1 + $0xb0] sm:$0xff]
      %v364 = vld [vmem:[%s1 + $0xb8] sm:$0xff]
      %v365 = vld [vmem:[%s1 + $0xc0] sm:$0xff]
      %v366 = vld [vmem:[%s1 + $0xc8] sm:$0xff]
      %v367 = vld [vmem:[%s1 + $0xd0] sm:$0xff]
      %v368 = vld [vmem:[%s1 + $0xd8] sm:$0xff]
      %v369 = vld [vmem:[%s1 + $0xe0] sm:$0xff]
      %v370 = vld [vmem:[%s1 + $0xe8] sm:$0xff]
      %v371 = vld [vmem:[%s1 + $0xf0] sm:$0xff]
      %v372 = vld [vmem:[%s1 + $0xf8] sm:$0xff]
      %v373 = vld [vmem:[%s1 + $0x100] sm:$0xff]
      %v374 = vld [vmem:[%s1 + $0x108] sm:$0xff]
      %v375 = vld [vmem:[%s1 + $0x110] sm:$0xff]
      %v376 = vld [vmem:[%s1 + $0x118] sm:$0xff]
      %v377 = vld [vmem:[%s1 + $0x120] sm:$0xff]
      %v378 = vld [vmem:[%s1 + $0x128] sm:$0xff]
      %v379 = vld [vmem:[%s1 + $0x130] sm:$0xff]
      %v380 = vld [vmem:[%s1 + $0x138] sm:$0xff]
      %v381 = vld [vmem:[%s1 + $0x140] sm:$0xff]
      %v382 = vld [vmem:[%s1 + $0x148] sm:$0xff]
      %v383 = vld [vmem:[%s1 + $0x150] sm:$0xff]
      %v384 = vld [vmem:[%s1 + $0x158] sm:$0xff]
      %v385 = vld [vmem:[%s1 + $0x160] sm:$0xff]
      %v386 = vld [vmem:[%s1 + $0x168] sm:$0xff]
      %v387 = vld [vmem:[%s1 + $0x170] sm:$0xff]
      %v388 = vld [vmem:[%s1 + $0x178] sm:$0xff]
      %v389 = vld [vmem:[%s1 + $0x180] sm:$0xff]
      %v390 = vld [vmem:[%s1 + $0x188] sm:$0xff]
      %v391 = vld [vmem:[%s1 + $0x190] sm:$0xff]
      %v392 = vld [vmem:[%s1 + $0x198] sm:$0xff]
      %v393 = vld [vmem:[%s1 + $0x1a0] sm:$0xff]
      %v394 = vld [vmem:[%s1 + $0x1a8] sm:$0xff]
      %v395 = vld [vmem:[%s1 + $0x1b0] sm:$0xff]
      %v396 = vld [vmem:[%s1 + $0x1b8] sm:$0xff]
      %v397 = vld [vmem:[%s1 + $0x1c0] sm:$0xff]
      %v398 = vld [vmem:[%s1 + $0x1c8] sm:$0xff]
      %v399 = vld [vmem:[%s1 + $0x1d0] sm:$0xff]
      %v400 = vld [vmem:[%s1 + $0x1d8] sm:$0xff]
      %v401 = vld [vmem:[%s1 + $0x1e0] sm:$0xff]
      %v402 = vld [vmem:[%s1 + $0x1e8] sm:$0xff]
      %v403 = vld [vmem:[%s1 + $0x1f0] sm:$0xff]
      %v404 = vld [vmem:[%s1 + $0x1f8] sm:$0xff]
      %v405 = vld [vmem:[%s2] sm:$0x1]
      %v407 = vperm.slane %v405, 0
      %409 = vmatpush.msra.mxu0 %v356
      %410 = vmatpush.msra.mxu0 %v355
      %411 = vmatpush.msra.mxu0 %v354
      %412 = vmatpush.msra.mxu0 %v353
      %413 = vmatpush.msra.mxu0 %v352
      %414 = vmatpush.msra.mxu0 %v351
      %415 = vmatpush.msra.mxu0 %v350
      %416 = vmatpush.msra.mxu0 %v349
      %417 = vmatpush.msra.mxu0 %v348
      %418 = vmatpush.msra.mxu0 %v347
      %419 = vmatpush.msra.mxu0 %v346
      %420 = vmatpush.msra.mxu0 %v345
      %421 = vmatpush.msra.mxu0 %v344
      %422 = vmatpush.msra.mxu0 %v343
      %423 = vmatpush.msra.mxu0 %v342
      %424 = vmatpush.msra.mxu0 %v341
      %425 = vmatmul.f32.gmra.mxu0 %v277
      %v426 = vpop.f32.mrf.mxu0
      %v427 = vadd.f32 %v407, %v426
      %428 = vmatmul.f32.gmra.mxu0 %v281
      %v429 = vpop.f32.mrf.mxu0
      %v430 = vadd.f32 %v407, %v429
      %431 = vmatmul.f32.gmra.mxu0 %v285
      %v432 = vpop.f32.mrf.mxu0
      %v433 = vadd.f32 %v407, %v432
      %434 = vmatmul.f32.gmra.mxu0 %v289
      %v435 = vpop.f32.mrf.mxu0
      %v436 = vadd.f32 %v407, %v435
      %437 = vmatmul.f32.gmra.mxu0 %v293
      %v438 = vpop.f32.mrf.mxu0
      %v439 = vadd.f32 %v407, %v438
      %440 = vmatmul.f32.gmra.mxu0 %v297
      %v441 = vpop.f32.mrf.mxu0
      %v442 = vadd.f32 %v407, %v441
      %443 = vmatmul.f32.gmra.mxu0 %v301
      %v444 = vpop.f32.mrf.mxu0
      %v445 = vadd.f32 %v407, %v444
      %446 = vmatmul.f32.gmra.mxu0 %v305
      %v447 = vpop.f32.mrf.mxu0
      %v448 = vadd.f32 %v407, %v447
      %449 = vmatmul.f32.gmra.mxu0 %v309
      %v450 = vpop.f32.mrf.mxu0
      %v451 = vadd.f32 %v407, %v450
      %452 = vmatmul.f32.gmra.mxu0 %v313
      %v453 = vpop.f32.mrf.mxu0
      %v454 = vadd.f32 %v407, %v453
      %455 = vmatmul.f32.gmra.mxu0 %v317
      %v456 = vpop.f32.mrf.mxu0
      %v457 = vadd.f32 %v407, %v456
      %458 = vmatmul.f32.gmra.mxu0 %v321
      %v459 = vpop.f32.mrf.mxu0
      %v460 = vadd.f32 %v407, %v459
      %461 = vmatmul.f32.gmra.mxu0 %v325
      %v462 = vpop.f32.mrf.mxu0
      %v463 = vadd.f32 %v407, %v462
      %464 = vmatmul.f32.gmra.mxu0 %v329
      %v465 = vpop.f32.mrf.mxu0
      %v466 = vadd.f32 %v407, %v465
      %467 = vmatmul.f32.gmra.mxu0 %v333
      %v468 = vpop.f32.mrf.mxu0
      %v469 = vadd.f32 %v407, %v468
      %470 = vmatmul.f32.gmra.mxu0 %v337
      %v471 = vpop.f32.mrf.mxu0
      %v472 = vadd.f32 %v407, %v471
      %473 = vdwg.mxu0
      %474 = vmatpush.msra.mxu0 %v372
      %475 = vmatpush.msra.mxu0 %v371
      %476 = vmatpush.msra.mxu0 %v370
      %477 = vmatpush.msra.mxu0 %v369
      %478 = vmatpush.msra.mxu0 %v368
      %479 = vmatpush.msra.mxu0 %v367
      %480 = vmatpush.msra.mxu0 %v366
      %481 = vmatpush.msra.mxu0 %v365
      %482 = vmatpush.msra.mxu0 %v364
      %483 = vmatpush.msra.mxu0 %v363
      %484 = vmatpush.msra.mxu0 %v362
      %485 = vmatpush.msra.mxu0 %v361
      %486 = vmatpush.msra.mxu0 %v360
      %487 = vmatpush.msra.mxu0 %v359
      %488 = vmatpush.msra.mxu0 %v358
      %489 = vmatpush.msra.mxu0 %v357
      %490 = vmatmul.f32.gmra.mxu0 %v278
      %v491 = vpop.f32.mrf.mxu0
      %v492 = vadd.f32 %v427, %v491
      %493 = vmatmul.f32.gmra.mxu0 %v282
      %v494 = vpop.f32.mrf.mxu0
      %v495 = vadd.f32 %v430, %v494
      %496 = vmatmul.f32.gmra.mxu0 %v286
      %v497 = vpop.f32.mrf.mxu0
      %v498 = vadd.f32 %v433, %v497
      %499 = vmatmul.f32.gmra.mxu0 %v290
      %v500 = vpop.f32.mrf.mxu0
      %v501 = vadd.f32 %v436, %v500
      %502 = vmatmul.f32.gmra.mxu0 %v294
      %v503 = vpop.f32.mrf.mxu0
      %v504 = vadd.f32 %v439, %v503
      %505 = vmatmul.f32.gmra.mxu0 %v298
      %v506 = vpop.f32.mrf.mxu0
      %v507 = vadd.f32 %v442, %v506
      %508 = vmatmul.f32.gmra.mxu0 %v302
      %v509 = vpop.f32.mrf.mxu0
      %v510 = vadd.f32 %v445, %v509
      %511 = vmatmul.f32.gmra.mxu0 %v306
      %v512 = vpop.f32.mrf.mxu0
      %v513 = vadd.f32 %v448, %v512
      %514 = vmatmul.f32.gmra.mxu0 %v310
      %v515 = vpop.f32.mrf.mxu0
      %v516 = vadd.f32 %v451, %v515
      %517 = vmatmul.f32.gmra.mxu0 %v314
      %v518 = vpop.f32.mrf.mxu0
      %v519 = vadd.f32 %v454, %v518
      %520 = vmatmul.f32.gmra.mxu0 %v318
      %v521 = vpop.f32.mrf.mxu0
      %v522 = vadd.f32 %v457, %v521
      %523 = vmatmul.f32.gmra.mxu0 %v322
      %v524 = vpop.f32.mrf.mxu0
      %v525 = vadd.f32 %v460, %v524
      %526 = vmatmul.f32.gmra.mxu0 %v326
      %v527 = vpop.f32.mrf.mxu0
      %v528 = vadd.f32 %v463, %v527
      %529 = vmatmul.f32.gmra.mxu0 %v330
      %v530 = vpop.f32.mrf.mxu0
      %v531 = vadd.f32 %v466, %v530
      %532 = vmatmul.f32.gmra.mxu0 %v334
      %v533 = vpop.f32.mrf.mxu0
      %v534 = vadd.f32 %v469, %v533
      %535 = vmatmul.f32.gmra.mxu0 %v338
      %v536 = vpop.f32.mrf.mxu0
      %v537 = vadd.f32 %v472, %v536
      %538 = vdwg.mxu0
      %539 = vmatpush.msra.mxu0 %v388
      %540 = vmatpush.msra.mxu0 %v387
      %541 = vmatpush.msra.mxu0 %v386
      %542 = vmatpush.msra.mxu0 %v385
      %543 = vmatpush.msra.mxu0 %v384
      %544 = vmatpush.msra.mxu0 %v383
      %545 = vmatpush.msra.mxu0 %v382
      %546 = vmatpush.msra.mxu0 %v381
      %547 = vmatpush.msra.mxu0 %v380
      %548 = vmatpush.msra.mxu0 %v379
      %549 = vmatpush.msra.mxu0 %v378
      %550 = vmatpush.msra.mxu0 %v377
      %551 = vmatpush.msra.mxu0 %v376
      %552 = vmatpush.msra.mxu0 %v375
      %553 = vmatpush.msra.mxu0 %v374
      %554 = vmatpush.msra.mxu0 %v373
      %555 = vmatmul.f32.gmra.mxu0 %v279
      %v556 = vpop.f32.mrf.mxu0
      %v557 = vadd.f32 %v492, %v556
      %558 = vmatmul.f32.gmra.mxu0 %v283
      %v559 = vpop.f32.mrf.mxu0
      %v560 = vadd.f32 %v495, %v559
      %561 = vmatmul.f32.gmra.mxu0 %v287
      %v562 = vpop.f32.mrf.mxu0
      %v563 = vadd.f32 %v498, %v562
      %564 = vmatmul.f32.gmra.mxu0 %v291
      %v565 = vpop.f32.mrf.mxu0
      %v566 = vadd.f32 %v501, %v565
      %567 = vmatmul.f32.gmra.mxu0 %v295
      %v568 = vpop.f32.mrf.mxu0
      %v569 = vadd.f32 %v504, %v568
      %570 = vmatmul.f32.gmra.mxu0 %v299
      %v571 = vpop.f32.mrf.mxu0
      %v572 = vadd.f32 %v507, %v571
      %573 = vmatmul.f32.gmra.mxu0 %v303
      %v574 = vpop.f32.mrf.mxu0
      %v575 = vadd.f32 %v510, %v574
      %576 = vmatmul.f32.gmra.mxu0 %v307
      %v577 = vpop.f32.mrf.mxu0
      %v578 = vadd.f32 %v513, %v577
      %579 = vmatmul.f32.gmra.mxu0 %v311
      %v580 = vpop.f32.mrf.mxu0
      %v581 = vadd.f32 %v516, %v580
      %582 = vmatmul.f32.gmra.mxu0 %v315
      %v583 = vpop.f32.mrf.mxu0
      %v584 = vadd.f32 %v519, %v583
      %585 = vmatmul.f32.gmra.mxu0 %v319
      %v586 = vpop.f32.mrf.mxu0
      %v587 = vadd.f32 %v522, %v586
      %588 = vmatmul.f32.gmra.mxu0 %v323
      %v589 = vpop.f32.mrf.mxu0
      %v590 = vadd.f32 %v525, %v589
      %591 = vmatmul.f32.gmra.mxu0 %v327
      %v592 = vpop.f32.mrf.mxu0
      %v593 = vadd.f32 %v528, %v592
      %594 = vmatmul.f32.gmra.mxu0 %v331
      %v595 = vpop.f32.mrf.mxu0
      %v596 = vadd.f32 %v531, %v595
      %597 = vmatmul.f32.gmra.mxu0 %v335
      %v598 = vpop.f32.mrf.mxu0
      %v599 = vadd.f32 %v534, %v598
      %600 = vmatmul.f32.gmra.mxu0 %v339
      %v601 = vpop.f32.mrf.mxu0
      %v602 = vadd.f32 %v537, %v601
      %603 = vdwg.mxu0
      %604 = vmatpush.msra.mxu0 %v404
      %605 = vmatpush.msra.mxu0 %v403
      %606 = vmatpush.msra.mxu0 %v402
      %607 = vmatpush.msra.mxu0 %v401
      %608 = vmatpush.msra.mxu0 %v400
      %609 = vmatpush.msra.mxu0 %v399
      %610 = vmatpush.msra.mxu0 %v398
      %611 = vmatpush.msra.mxu0 %v397
      %612 = vmatpush.msra.mxu0 %v396
      %613 = vmatpush.msra.mxu0 %v395
      %614 = vmatpush.msra.mxu0 %v394
      %615 = vmatpush.msra.mxu0 %v393
      %616 = vmatpush.msra.mxu0 %v392
      %617 = vmatpush.msra.mxu0 %v391
      %618 = vmatpush.msra.mxu0 %v390
      %619 = vmatpush.msra.mxu0 %v389
      %620 = vmatmul.f32.gmra.mxu0 %v280
      %v621 = vpop.f32.mrf.mxu0
      %v622 = vadd.f32 %v557, %v621
      %623 = vmatmul.f32.gmra.mxu0 %v284
      %v624 = vpop.f32.mrf.mxu0
      %v625 = vadd.f32 %v560, %v624
      %626 = vmatmul.f32.gmra.mxu0 %v288
      %v627 = vpop.f32.mrf.mxu0
      %v628 = vadd.f32 %v563, %v627
      %629 = vmatmul.f32.gmra.mxu0 %v292
      %v630 = vpop.f32.mrf.mxu0
      %v631 = vadd.f32 %v566, %v630
      %632 = vmatmul.f32.gmra.mxu0 %v296
      %v633 = vpop.f32.mrf.mxu0
      %v634 = vadd.f32 %v569, %v633
      %635 = vmatmul.f32.gmra.mxu0 %v300
      %v636 = vpop.f32.mrf.mxu0
      %v637 = vadd.f32 %v572, %v636
      %638 = vmatmul.f32.gmra.mxu0 %v304
      %v639 = vpop.f32.mrf.mxu0
      %v640 = vadd.f32 %v575, %v639
      %641 = vmatmul.f32.gmra.mxu0 %v308
      %v642 = vpop.f32.mrf.mxu0
      %v643 = vadd.f32 %v578, %v642
      %644 = vmatmul.f32.gmra.mxu0 %v312
      %v645 = vpop.f32.mrf.mxu0
      %v646 = vadd.f32 %v581, %v645
      %647 = vmatmul.f32.gmra.mxu0 %v316
      %v648 = vpop.f32.mrf.mxu0
      %v649 = vadd.f32 %v584, %v648
      %650 = vmatmul.f32.gmra.mxu0 %v320
      %v651 = vpop.f32.mrf.mxu0
      %v652 = vadd.f32 %v587, %v651
      %653 = vmatmul.f32.gmra.mxu0 %v324
      %v654 = vpop.f32.mrf.mxu0
      %v655 = vadd.f32 %v590, %v654
      %656 = vmatmul.f32.gmra.mxu0 %v328
      %v657 = vpop.f32.mrf.mxu0
      %v658 = vadd.f32 %v593, %v657
      %659 = vmatmul.f32.gmra.mxu0 %v332
      %v660 = vpop.f32.mrf.mxu0
      %v661 = vadd.f32 %v596, %v660
      %662 = vmatmul.f32.gmra.mxu0 %v336
      %v663 = vpop.f32.mrf.mxu0
      %v664 = vadd.f32 %v599, %v663
      %665 = vmatmul.f32.gmra.mxu0 %v340
      %v666 = vpop.f32.mrf.mxu0
      %v667 = vadd.f32 %v602, %v666
      %668 = vdwg.mxu0
      %v669 = vmul.f32 %v622, 0.2
      %v670 = vmul.f32 %v625, 0.2
      %v671 = vmul.f32 %v628, 0.2
      %v672 = vmul.f32 %v631, 0.2
      %v673 = vmul.f32 %v634, 0.2
      %v674 = vmul.f32 %v637, 0.2
      %v675 = vmul.f32 %v640, 0.2
      %v676 = vmul.f32 %v643, 0.2
      %v677 = vmul.f32 %v646, 0.2
      %v678 = vmul.f32 %v649, 0.2
      %v679 = vmul.f32 %v652, 0.2
      %v680 = vmul.f32 %v655, 0.2
      %v681 = vmul.f32 %v658, 0.2
      %v682 = vmul.f32 %v661, 0.2
      %v683 = vmul.f32 %v664, 0.2
      %v684 = vmul.f32 %v667, 0.2
      %v685 = vmax.f32 %v622, %v669
      %v686 = vmax.f32 %v625, %v670
      %v687 = vmax.f32 %v628, %v671
      %v688 = vmax.f32 %v631, %v672
      %v689 = vmax.f32 %v634, %v673
      %v690 = vmax.f32 %v637, %v674
      %v691 = vmax.f32 %v640, %v675
      %v692 = vmax.f32 %v643, %v676
      %v693 = vmax.f32 %v646, %v677
      %v694 = vmax.f32 %v649, %v678
      %v695 = vmax.f32 %v652, %v679
      %v696 = vmax.f32 %v655, %v680
      %v697 = vmax.f32 %v658, %v681
      %v698 = vmax.f32 %v661, %v682
      %v699 = vmax.f32 %v664, %v683
      %v700 = vmax.f32 %v667, %v684
      %v701 = vld [vmem:[%s3] sm:$0xff]
      %v702 = vld [vmem:[%s3 + $0x8] sm:$0xff]
      %v703 = vld [vmem:[%s3 + $0x10] sm:$0xff]
      %v704 = vld [vmem:[%s3 + $0x18] sm:$0xff]
      %v705 = vld [vmem:[%s3 + $0x20] sm:$0xff]
      %v706 = vld [vmem:[%s3 + $0x28] sm:$0xff]
      %v707 = vld [vmem:[%s3 + $0x30] sm:$0xff]
      %v708 = vld [vmem:[%s3 + $0x38] sm:$0xff]
      %v709 = vld [vmem:[%s3 + $0x40] sm:$0xff]
      %v710 = vld [vmem:[%s3 + $0x48] sm:$0xff]
      %v711 = vld [vmem:[%s3 + $0x50] sm:$0xff]
      %v712 = vld [vmem:[%s3 + $0x58] sm:$0xff]
      %v713 = vld [vmem:[%s3 + $0x60] sm:$0xff]
      %v714 = vld [vmem:[%s3 + $0x68] sm:$0xff]
      %v715 = vld [vmem:[%s3 + $0x70] sm:$0xff]
      %v716 = vld [vmem:[%s3 + $0x78] sm:$0xff]
      %v717 = vld [vmem:[%s4] sm:$0x1]
      %v719 = vperm.slane %v717, 0
      %721 = vmatpush.msra.mxu0 %v716
      %722 = vmatpush.msra.mxu0 %v715
      %723 = vmatpush.msra.mxu0 %v714
      %724 = vmatpush.msra.mxu0 %v713
      %725 = vmatpush.msra.mxu0 %v712
      %726 = vmatpush.msra.mxu0 %v711
      %727 = vmatpush.msra.mxu0 %v710
      %728 = vmatpush.msra.mxu0 %v709
      %729 = vmatpush.msra.mxu0 %v708
      %730 = vmatpush.msra.mxu0 %v707
      %731 = vmatpush.msra.mxu0 %v706
      %732 = vmatpush.msra.mxu0 %v705
      %733 = vmatpush.msra.mxu0 %v704
      %734 = vmatpush.msra.mxu0 %v703
      %735 = vmatpush.msra.mxu0 %v702
      %736 = vmatpush.msra.mxu0 %v701
      %737 = vmatmul.f32.gmra.mxu0 %v685
      %v738 = vpop.f32.mrf.mxu0
      %v739 = vadd.f32 %v719, %v738
      %740 = vmatmul.f32.gmra.mxu0 %v686
      %v741 = vpop.f32.mrf.mxu0
      %v742 = vadd.f32 %v719, %v741
      %743 = vmatmul.f32.gmra.mxu0 %v687
      %v744 = vpop.f32.mrf.mxu0
      %v745 = vadd.f32 %v719, %v744
      %746 = vmatmul.f32.gmra.mxu0 %v688
      %v747 = vpop.f32.mrf.mxu0
      %v748 = vadd.f32 %v719, %v747
      %749 = vmatmul.f32.gmra.mxu0 %v689
      %v750 = vpop.f32.mrf.mxu0
      %v751 = vadd.f32 %v719, %v750
      %752 = vmatmul.f32.gmra.mxu0 %v690
      %v753 = vpop.f32.mrf.mxu0
      %v754 = vadd.f32 %v719, %v753
      %755 = vmatmul.f32.gmra.mxu0 %v691
      %v756 = vpop.f32.mrf.mxu0
      %v757 = vadd.f32 %v719, %v756
      %758 = vmatmul.f32.gmra.mxu0 %v692
      %v759 = vpop.f32.mrf.mxu0
      %v760 = vadd.f32 %v719, %v759
      %761 = vmatmul.f32.gmra.mxu0 %v693
      %v762 = vpop.f32.mrf.mxu0
      %v763 = vadd.f32 %v719, %v762
      %764 = vmatmul.f32.gmra.mxu0 %v694
      %v765 = vpop.f32.mrf.mxu0
      %v766 = vadd.f32 %v719, %v765
      %767 = vmatmul.f32.gmra.mxu0 %v695
      %v768 = vpop.f32.mrf.mxu0
      %v769 = vadd.f32 %v719, %v768
      %770 = vmatmul.f32.gmra.mxu0 %v696
      %v771 = vpop.f32.mrf.mxu0
      %v772 = vadd.f32 %v719, %v771
      %773 = vmatmul.f32.gmra.mxu0 %v697
      %v774 = vpop.f32.mrf.mxu0
      %v775 = vadd.f32 %v719, %v774
      %776 = vmatmul.f32.gmra.mxu0 %v698
      %v777 = vpop.f32.mrf.mxu0
      %v778 = vadd.f32 %v719, %v777
      %779 = vmatmul.f32.gmra.mxu0 %v699
      %v780 = vpop.f32.mrf.mxu0
      %v781 = vadd.f32 %v719, %v780
      %782 = vmatmul.f32.gmra.mxu0 %v700
      %v783 = vpop.f32.mrf.mxu0
      %v784 = vadd.f32 %v719, %v783
      %785 = vdwg.mxu0
      %v786 = vmul.f32 %v739, 0.2
      %v787 = vmul.f32 %v742, 0.2
      %v788 = vmul.f32 %v745, 0.2
      %v789 = vmul.f32 %v748, 0.2
      %v790 = vmul.f32 %v751, 0.2
      %v791 = vmul.f32 %v754, 0.2
      %v792 = vmul.f32 %v757, 0.2
      %v793 = vmul.f32 %v760, 0.2
      %v794 = vmul.f32 %v763, 0.2
      %v795 = vmul.f32 %v766, 0.2
      %v796 = vmul.f32 %v769, 0.2
      %v797 = vmul.f32 %v772, 0.2
      %v798 = vmul.f32 %v775, 0.2
      %v799 = vmul.f32 %v778, 0.2
      %v800 = vmul.f32 %v781, 0.2
      %v801 = vmul.f32 %v784, 0.2
      %v802 = vmax.f32 %v739, %v786
      %v803 = vmax.f32 %v742, %v787
      %v804 = vmax.f32 %v745, %v788
      %v805 = vmax.f32 %v748, %v789
      %v806 = vmax.f32 %v751, %v790
      %v807 = vmax.f32 %v754, %v791
      %v808 = vmax.f32 %v757, %v792
      %v809 = vmax.f32 %v760, %v793
      %v810 = vmax.f32 %v763, %v794
      %v811 = vmax.f32 %v766, %v795
      %v812 = vmax.f32 %v769, %v796
      %v813 = vmax.f32 %v772, %v797
      %v814 = vmax.f32 %v775, %v798
      %v815 = vmax.f32 %v778, %v799
      %v816 = vmax.f32 %v781, %v800
      %v817 = vmax.f32 %v784, %v801
      %v818 = vld [vmem:[%s5] sm:$0x1]
      %v820 = vperm.slane %v818, 0
      %v822 = vmul.f32 %v802, %v820
      %v823 = vmul.f32 %v803, %v820
      %v824 = vmul.f32 %v804, %v820
      %v825 = vmul.f32 %v805, %v820
      %v826 = vmul.f32 %v806, %v820
      %v827 = vmul.f32 %v807, %v820
      %v828 = vmul.f32 %v808, %v820
      %v829 = vmul.f32 %v809, %v820
      %v830 = vmul.f32 %v810, %v820
      %v831 = vmul.f32 %v811, %v820
      %v832 = vmul.f32 %v812, %v820
      %v833 = vmul.f32 %v813, %v820
      %v834 = vmul.f32 %v814, %v820
      %v835 = vmul.f32 %v815, %v820
      %v836 = vmul.f32 %v816, %v820
      %v837 = vmul.f32 %v817, %v820
      %vm838 = vcmask 523264
      %v839 = vsel %vm838, %v822, 0.0
      %840 = vadd.xlane.f32.xlu0 %v839
      %v841 = vpop.xlane.xlu0 %840
      %v842 = vsel %vm838, %v823, 0.0
      %843 = vadd.xlane.f32.xlu0 %v842
      %v844 = vpop.xlane.xlu0 %843
      %v845 = vsel %vm838, %v824, 0.0
      %846 = vadd.xlane.f32.xlu0 %v845
      %v847 = vpop.xlane.xlu0 %846
      %v848 = vsel %vm838, %v825, 0.0
      %849 = vadd.xlane.f32.xlu0 %v848
      %v850 = vpop.xlane.xlu0 %849
      %v851 = vsel %vm838, %v826, 0.0
      %852 = vadd.xlane.f32.xlu0 %v851
      %v853 = vpop.xlane.xlu0 %852
      %v854 = vsel %vm838, %v827, 0.0
      %855 = vadd.xlane.f32.xlu0 %v854
      %v856 = vpop.xlane.xlu0 %855
      %v857 = vsel %vm838, %v828, 0.0
      %858 = vadd.xlane.f32.xlu0 %v857
      %v859 = vpop.xlane.xlu0 %858
      %v860 = vsel %vm838, %v829, 0.0
      %861 = vadd.xlane.f32.xlu0 %v860
      %v862 = vpop.xlane.xlu0 %861
      %v863 = vsel %vm838, %v830, 0.0
      %864 = vadd.xlane.f32.xlu0 %v863
      %v865 = vpop.xlane.xlu0 %864
      %v866 = vsel %vm838, %v831, 0.0
      %867 = vadd.xlane.f32.xlu0 %v866
      %v868 = vpop.xlane.xlu0 %867
      %v869 = vsel %vm838, %v832, 0.0
      %870 = vadd.xlane.f32.xlu0 %v869
      %v871 = vpop.xlane.xlu0 %870
      %v872 = vsel %vm838, %v833, 0.0
      %873 = vadd.xlane.f32.xlu0 %v872
      %v874 = vpop.xlane.xlu0 %873
      %v875 = vsel %vm838, %v834, 0.0
      %876 = vadd.xlane.f32.xlu0 %v875
      %v877 = vpop.xlane.xlu0 %876
      %v878 = vsel %vm838, %v835, 0.0
      %879 = vadd.xlane.f32.xlu0 %v878
      %v880 = vpop.xlane.xlu0 %879
      %v881 = vsel %vm838, %v836, 0.0
      %882 = vadd.xlane.f32.xlu0 %v881
      %v883 = vpop.xlane.xlu0 %882
      %v884 = vsel %vm838, %v837, 0.0
      %885 = vadd.xlane.f32.xlu0 %v884
      %v886 = vpop.xlane.xlu0 %885
      %v887 = vld [vmem:[#allocation2] sm:$0x1]
      %v889 = vperm.slane %v887, 0
      %v891 = vadd.f32 %v841, %v889
      %v892 = vadd.f32 %v844, %v889
      %v893 = vadd.f32 %v847, %v889
      %v894 = vadd.f32 %v850, %v889
      %v895 = vadd.f32 %v853, %v889
      %v896 = vadd.f32 %v856, %v889
      %v897 = vadd.f32 %v859, %v889
      %v898 = vadd.f32 %v862, %v889
      %v899 = vadd.f32 %v865, %v889
      %v900 = vadd.f32 %v868, %v889
      %v901 = vadd.f32 %v871, %v889
      %v902 = vadd.f32 %v874, %v889
      %v903 = vadd.f32 %v877, %v889
      %v904 = vadd.f32 %v880, %v889
      %v905 = vadd.f32 %v883, %v889
      %v906 = vadd.f32 %v886, %v889
      %v907 = vmul.f32 %v891, 0.2
      %v908 = vmul.f32 %v892, 0.2
      %v909 = vmul.f32 %v893, 0.2
      %v910 = vmul.f32 %v894, 0.2
      %v911 = vmul.f32 %v895, 0.2
      %v912 = vmul.f32 %v896, 0.2
      %v913 = vmul.f32 %v897, 0.2
      %v914 = vmul.f32 %v898, 0.2
      %v915 = vmul.f32 %v899, 0.2
      %v916 = vmul.f32 %v900, 0.2
      %v917 = vmul.f32 %v901, 0.2
      %v918 = vmul.f32 %v902, 0.2
      %v919 = vmul.f32 %v903, 0.2
      %v920 = vmul.f32 %v904, 0.2
      %v921 = vmul.f32 %v905, 0.2
      %v922 = vmul.f32 %v906, 0.2
      %v923 = vmax.f32 %v891, %v907
      %v924 = vmax.f32 %v892, %v908
      %v925 = vmax.f32 %v893, %v909
      %v926 = vmax.f32 %v894, %v910
      %v927 = vmax.f32 %v895, %v911
      %v928 = vmax.f32 %v896, %v912
      %v929 = vmax.f32 %v897, %v913
      %v930 = vmax.f32 %v898, %v914
      %v931 = vmax.f32 %v899, %v915
      %v932 = vmax.f32 %v900, %v916
      %v933 = vmax.f32 %v901, %v917
      %v934 = vmax.f32 %v902, %v918
      %v935 = vmax.f32 %v903, %v919
      %v936 = vmax.f32 %v904, %v920
      %v937 = vmax.f32 %v905, %v921
      %v938 = vmax.f32 %v906, %v922
      %vm939 = vcmask 7168
      %v940 = vsel %vm939, %v923, 0.0
      %v941 = vsel %vm939, %v924, 0.0
      %v942 = vadd.f32 %v940, %v941
      %v943 = vsel %vm939, %v925, 0.0
      %v944 = vadd.f32 %v942, %v943
      %v945 = vsel %vm939, %v926, 0.0
      %v946 = vadd.f32 %v944, %v945
      %v947 = vsel %vm939, %v927, 0.0
      %v948 = vadd.f32 %v946, %v947
      %v949 = vsel %vm939, %v928, 0.0
      %v950 = vadd.f32 %v948, %v949
      %v951 = vsel %vm939, %v929, 0.0
      %v952 = vadd.f32 %v950, %v951
      %v953 = vsel %vm939, %v930, 0.0
      %v954 = vadd.f32 %v952, %v953
      %v955 = vsel %vm939, %v931, 0.0
      %v956 = vadd.f32 %v954, %v955
      %v957 = vsel %vm939, %v932, 0.0
      %v958 = vadd.f32 %v956, %v957
      %v959 = vsel %vm939, %v933, 0.0
      %v960 = vadd.f32 %v958, %v959
      %v961 = vsel %vm939, %v934, 0.0
      %v962 = vadd.f32 %v960, %v961
      %v963 = vsel %vm939, %v935, 0.0
      %v964 = vadd.f32 %v962, %v963
      %v965 = vsel %vm939, %v936, 0.0
      %v966 = vadd.f32 %v964, %v965
      %v967 = vsel %vm939, %v937, 0.0
      %v968 = vadd.f32 %v966, %v967
      %v969 = vsel %vm939, %v938, 0.0
      %v970 = vadd.f32 %v968, %v969
      %v971 = vrot.slane %v970, 4
      %v972 = vadd.f32 %v970, %v971
      %v973 = vrot.slane %v972, 2
      %v974 = vadd.f32 %v972, %v973
      %v975 = vrot.slane %v974, 1
      %v976 = vadd.f32 %v974, %v975
      %v977 = vrcp.pop 128.0
      %v978 = vmul.f32 128.0, %v977
      %v979 = vsub.f32 1.0, %v978
      %v980 = vmul.f32 %v977, %v979
      %v981 = vadd.f32 %v977, %v980
      %vm982 = vweird.f32 %v977
      %v983 = vsel %vm982, %v977, %v981
      %v984 = vmul.f32 %v976, %v983
      %vm985 = vcmask 0
      %986 = vst.msk [vmem:[%s276] sm:$0x1] %vm985, %v984
      %p987 = scmp.lt.s32.totalorder %s20, 1
      %s988 = scalar_select %p987, %s20, 1
      %s989 = scalar_lea.vmem %s7, %s988
      // Predicated region
      $region49: #{discriminator_forward.3} parent=47 // pred_check
        %p990 = pneg %p190
      $region50: #{discriminator_forward.3} parent=47 // pred_check_branch
        %992 = sbr.rel (%p990) target = $region52
      $region51: #{discriminator_forward.3} parent=47 // pred_region
        _
      $region52: #{discriminator_forward.3} parent=47 // pred_fallthru
        _
    $region48: #{discriminator_forward.3} parent=5 // pred_fallthru
      _
    %p993 = scmp.le.s32.totalorder 2, %s15
    // Predicated region
    $region53: #{discriminator_forward.3} parent=5 // pred_check
      %p994 = pneg %p993
    $region54: #{discriminator_forward.3} parent=5 // pred_check_branch
      %996 = sbr.rel (%p994) target = $region56
    $region55: #{discriminator_forward.3} parent=5 // pred_region
      %s997 = ssub.s32 %s15, 2
      // Predicated region
      $region57: #{discriminator_forward.3} parent=55 // pred_check
        %p998 = pneg %p196
      $region58: #{discriminator_forward.3} parent=55 // pred_check_branch
        %1000 = sbr.rel (%p998) target = $region60
      $region59: #{discriminator_forward.3} parent=55 // pred_region
        %p1001 = scmp.lt.s32.totalorder %s21, 1
        %s1002 = scalar_select %p1001, %s21, 1
        %s1003 = scalar_lea.vmem %s7, %s1002
      $region60: #{discriminator_forward.3} parent=55 // pred_fallthru
        _
    $region56: #{discriminator_forward.3} parent=5 // pred_fallthru
      _
  $region6: #{discriminator_forward.3} parent=0 // loop_footer
    %s19 = sadd.s32 1, %s15
  $region7: #{discriminator_forward.3} parent=0 // loop_footer_branch
    %14 = sbr.rel target = $region3
  $region8: #{discriminator_forward.3} parent=0 // loop_exit
    _

</llo_original>
